<compile_context>
chip_gen: v5e
topology: v5e:2x2
jax: 0.10.0
libtpu: 0.0.40
codegen_flags: <defaults>
</compile_context>

<pallas_src>
import jax
import jax.numpy as jnp
from jax.experimental import pallas as pl
from jax.experimental.pallas import tpu as pltpu

_CP = 128  # lane padding for all channel widths (<= 64 real channels)


def _round_up(x, m):
    return (x + m - 1) // m * m


# ----------------------------- fused Pallas kernel ---------------------------------

def _make_fused_kernel(L, lo2, nblocks):
    def kernel(x_ref, wc_ref, bc_ref, wl_ref, bl_ref, o_ref, a_ref, b_ref):
        # Activation buffer layout: row 0 = left zero halo, rows 1..L = positions
        # 0..L-1, rows L+1..Lbuf-1 = right zero halo / sublane padding (always zero).
        a_ref[...] = x_ref[0]
        b_ref[...] = jnp.zeros_like(b_ref)

        def conv3(src_ref, blk, base):
            # 'same' conv1d(k=3) as 3 shifted matmuls on the zero-halo'd activation.
            xm1 = src_ref[pl.ds(0, L), :]   # x[l-1]
            x0 = src_ref[pl.ds(1, L), :]    # x[l]
            xp1 = src_ref[pl.ds(2, L), :]   # x[l+1]
            acc = jnp.dot(xm1, wc_ref[blk, base + 0],
                          preferred_element_type=jnp.float32)
            acc = acc + jnp.dot(x0, wc_ref[blk, base + 1],
                                preferred_element_type=jnp.float32)
            acc = acc + jnp.dot(xp1, wc_ref[blk, base + 2],
                                preferred_element_type=jnp.float32)
            return acc

        for blk in range(nblocks):
            # conv1 + relu
            h1 = conv3(a_ref, blk, 0) + bc_ref[blk, 0:1, :]
            b_ref[pl.ds(1, L), :] = jnp.maximum(h1, 0.0)
            # conv2 + 1x1 shortcut + residual add + relu
            h2 = conv3(b_ref, blk, 3) + bc_ref[blk, 1:2, :]
            sc = jnp.dot(a_ref[pl.ds(1, L), :], wc_ref[blk, 6],
                         preferred_element_type=jnp.float32) + bc_ref[blk, 2:3, :]
            a_ref[pl.ds(1, L), :] = jnp.maximum(h2 + sc, 0.0)

        # AvgPool1d(3) -> MaxPool1d(3) -> Flatten -> Linear, fused:
        # lane-wise weighted accumulation, then one cross-lane reduction.
        act = a_ref[pl.ds(1, L), :]                     # (L, 128) final activation
        third = jnp.float32(1.0 / 3.0)
        lane_acc = jnp.zeros((1, _CP), jnp.float32)
        for p in range(lo2):
            avgs = []
            for j in range(3):
                r = (p * 3 + j) * 3
                s = act[r:r + 1, :] + act[r + 1:r + 2, :] + act[r + 2:r + 3, :]
                avgs.append(s * third)
            pooled = jnp.maximum(jnp.maximum(avgs[0], avgs[1]), avgs[2])  # (1, 128)
            lane_acc = lane_acc + pooled * wl_ref[p:p + 1, :]
        res = jnp.sum(lane_acc) + bl_ref[0, 0]
        o_ref[...] = jnp.broadcast_to(res, o_ref.shape)  # lane-dense store; lane 0 used

    return kernel


# ---------------------- one-time parameter repacking (hoisted) ----------------------

def prepare_params(params, window_size):
    blocks = params["blocks"]
    nb = len(blocks)
    wc = jnp.zeros((nb, 7, _CP, _CP), jnp.float32)   # [block, {c1t0,c1t1,c1t2,c2t0,c2t1,c2t2,sc}, ci, co]
    bc = jnp.zeros((nb, 8, _CP), jnp.float32)        # rows 0/1/2 = b1/b2/bs
    for i, (w1, b1, w2, b2, ws, bs) in enumerate(blocks):
        cout, cin, _ = w1.shape
        for t in range(3):
            wc = wc.at[i, t, :cin, :cout].set(jnp.transpose(w1[:, :, t]))
            wc = wc.at[i, 3 + t, :cout, :cout].set(jnp.transpose(w2[:, :, t]))
        wc = wc.at[i, 6, :cin, :cout].set(jnp.transpose(ws[:, :, 0]))
        bc = bc.at[i, 0, :cout].set(b1)
        bc = bc.at[i, 1, :cout].set(b2)
        bc = bc.at[i, 2, :cout].set(bs)

    w_t, b_t = params["linear"]                      # torch: (1, C*Lo2), (1,)
    cout_last = blocks[-1][0].shape[0]
    lo2 = window_size // 3 // 3
    # torch flatten is (c, l)-major: w_t[0, c*Lo2 + p]  ->  wl[p, c]
    wl = jnp.zeros((8, _CP), jnp.float32)
    wl = wl.at[:lo2, :cout_last].set(jnp.transpose(w_t.reshape(cout_last, lo2)))
    bl = b_t.reshape(1, 1).astype(jnp.float32)
    return {"wc": wc, "bc": bc, "wl": wl, "bl": bl}


# --------------------------------- forward wrapper ----------------------------------

def cnn_forward(x_ncw, prep):
    n, _, L = x_ncw.shape
    lbuf = _round_up(L + 2, 8)
    lo2 = L // 3 // 3
    nb = prep["wc"].shape[0]

    # channels-last with zero conv-halo rows and zero-padded lanes
    x_k = jnp.zeros((n, lbuf, _CP), jnp.float32)
    x_k = x_k.at[:, 1:L + 1, 0].set(x_ncw[:, 0, :].astype(jnp.float32))

    kernel = _make_fused_kernel(L, lo2, nb)
    out3 = pl.pallas_call(
        kernel,
        out_shape=jax.ShapeDtypeStruct((n, 1, _CP), jnp.float32),
        grid_spec=pltpu.PrefetchScalarGridSpec(
            num_scalar_prefetch=0,
            grid=(n,),
            in_specs=[
                pl.BlockSpec((1, lbuf, _CP), lambda i: (i, 0, 0)),
                pl.BlockSpec((nb, 7, _CP, _CP), lambda i: (0, 0, 0, 0)),
                pl.BlockSpec((nb, 8, _CP), lambda i: (0, 0, 0)),
                pl.BlockSpec((8, _CP), lambda i: (0, 0)),
                pl.BlockSpec((1, 1), lambda i: (0, 0),
                             memory_space=pltpu.MemorySpace.SMEM),
            ],
            out_specs=pl.BlockSpec((1, 1, _CP), lambda i: (i, 0, 0)),
            scratch_shapes=[pltpu.VMEM((lbuf, _CP), jnp.float32),
                            pltpu.VMEM((lbuf, _CP), jnp.float32)],
        ),
        compiler_params=pltpu.CompilerParams(
            dimension_semantics=("parallel",)),
    )(x_k, prep["wc"], prep["bc"], prep["wl"], prep["bl"])
    return out3[:, 0, 0:1]


# --------------------------- pure-JAX reference (NCW) ------------------------------

def _ref_forward(x_ncw, params):
    def conv1d(x, w, b, pad):
        out = jax.lax.conv_general_dilated(
            x, w, window_strides=(1,), padding=[(pad, pad)],
            dimension_numbers=("NCH", "OIH", "NCH"))
        return out + b[None, :, None]

    out = x_ncw.astype(jnp.float32)
    for (w1, b1, w2, b2, ws, bs) in params["blocks"]:
        h = jax.nn.relu(conv1d(out, w1, b1, 1))
        h = conv1d(h, w2, b2, 1)
        out = jax.nn.relu(h + conv1d(out, ws, bs, 0))
    n, c, l = out.shape
    lo = l // 3
    avg = out[:, :, :lo * 3].reshape(n, c, lo, 3).mean(-1)
    lo2 = lo // 3
    mx = avg[:, :, :lo2 * 3].reshape(n, c, lo2, 3).max(-1)
    feats = mx.reshape(n, c * lo2)
    w_t, b_t = params["linear"]
    return feats @ w_t.T + b_t


# ------------------------------------- main -----------------------------------------

def _init_params(key, window_size):
    chans = [1, 8, 16, 32, 64]
    blocks = []
    for i in range(4):
        cin, cout = chans[i], chans[i + 1]
        key, k1, k2, k3, k4, k5, k6 = jax.random.split(key, 7)
        blocks.append((
            0.1 * jax.random.normal(k1, (cout, cin, 3), jnp.float32),   # conv1 weight
            0.1 * jax.random.normal(k2, (cout,), jnp.float32),          # conv1 bias
            0.1 * jax.random.normal(k3, (cout, cout, 3), jnp.float32),  # conv2 weight
            0.1 * jax.random.normal(k4, (cout,), jnp.float32),          # conv2 bias
            0.1 * jax.random.normal(k5, (cout, cin, 1), jnp.float32),   # shortcut 1x1 weight
            0.1 * jax.random.normal(k6, (cout,), jnp.float32),          # shortcut bias
        ))
    feat = (window_size // 3 // 3) * chans[-1]
    key, kw, kb = jax.random.split(key, 3)
    linear = (0.1 * jax.random.normal(kw, (1, feat), jnp.float32),
              0.1 * jax.random.normal(kb, (1,), jnp.float32))
    return {"blocks": blocks, "linear": linear}, key


if __name__ == "__main__":
    window_size = 18
    batch = 2

    params, key = _init_params(jax.random.PRNGKey(0), window_size)
    key, kx = jax.random.split(key)
    x = jax.random.normal(kx, (batch, 1, window_size), jnp.float32)

    prep = prepare_params(params, window_size)          # one-time weight repacking
    fwd = jax.jit(cnn_forward)
    out = jax.block_until_ready(fwd(x, prep))
    assert out.shape == (batch, 1), out.shape

    ref = jax.block_until_ready(_ref_forward(x, params))
    assert jnp.allclose(out, ref, rtol=1e-3, atol=1e-3), (out, ref)

    print("KERNEL_OK")
</pallas_src>

<mosaic_0001>
module attributes {stable_mosaic.version = 11 : i64} {
  func.func @kernel(%arg0: i32, %arg1: memref<1x24x128xf32, #tpu.memory_space<vmem>>, %arg2: memref<4x7x128x128xf32, #tpu.memory_space<vmem>>, %arg3: memref<4x8x128xf32, #tpu.memory_space<vmem>>, %arg4: memref<8x128xf32, #tpu.memory_space<vmem>>, %arg5: memref<1x1xf32, #tpu.memory_space<smem>>, %arg6: memref<1x1x128xf32, #tpu.memory_space<vmem>>, %arg7: memref<24x128xf32, #tpu.memory_space<vmem>>, %arg8: memref<24x128xf32, #tpu.memory_space<vmem>>) attributes {dimension_semantics = [#tpu.dimension_semantics<parallel>], iteration_bounds = array<i64: 2>, scalar_prefetch = 0 : i64, scratch_operands = 2 : i64, tpu.core_type = #tpu.core_type<tc>, window_params = [{transform_indices = @transform_0, window_bounds = array<i64: 1, 24, 128>}, {pipeline_mode = #tpu.pipeline_mode<synchronous>, transform_indices = @transform_1, window_bounds = array<i64: 4, 7, 128, 128>}, {pipeline_mode = #tpu.pipeline_mode<synchronous>, transform_indices = @transform_2, window_bounds = array<i64: 4, 8, 128>}, {pipeline_mode = #tpu.pipeline_mode<synchronous>, transform_indices = @transform_3, window_bounds = array<i64: 8, 128>}, {transform_indices = @transform_4, window_bounds = array<i64: 1, 1>}, {transform_indices = @transform_5, window_bounds = array<i64: 1, 1, 128>}]} {
    %c0 = arith.constant 0 : index
    %c0_0 = arith.constant 0 : index
    %c0_1 = arith.constant 0 : index
    %0 = vector.load %arg1[%c0, %c0_0, %c0_1] : memref<1x24x128xf32, #tpu.memory_space<vmem>>, vector<1x24x128xf32>
    %1 = vector.shape_cast %0 : vector<1x24x128xf32> to vector<24x128xf32>
    %c0_2 = arith.constant 0 : index
    %c0_3 = arith.constant 0 : index
    %2 = vector.load %arg7[%c0_2, %c0_3] : memref<24x128xf32, #tpu.memory_space<vmem>>, vector<24x128xf32>
    tpu.vector_store %arg7[%c0_2, %c0_3], %1 {strides = array<i32>} : memref<24x128xf32, #tpu.memory_space<vmem>>, vector<24x128xf32>,
    %cst = arith.constant 0.000000e+00 : f32
    %3 = vector.broadcast %cst : f32 to vector<24x128xf32>
    %c0_4 = arith.constant 0 : index
    %c0_5 = arith.constant 0 : index
    %4 = vector.load %arg8[%c0_4, %c0_5] : memref<24x128xf32, #tpu.memory_space<vmem>>, vector<24x128xf32>
    tpu.vector_store %arg8[%c0_4, %c0_5], %3 {strides = array<i32>} : memref<24x128xf32, #tpu.memory_space<vmem>>, vector<24x128xf32>,
    %c0_6 = arith.constant 0 : index
    %c0_7 = arith.constant 0 : index
    %5 = vector.load %arg7[%c0_6, %c0_7] : memref<24x128xf32, #tpu.memory_space<vmem>>, vector<18x128xf32>
    %c1 = arith.constant 1 : index
    %c0_8 = arith.constant 0 : index
    %6 = vector.load %arg7[%c1, %c0_8] : memref<24x128xf32, #tpu.memory_space<vmem>>, vector<18x128xf32>
    %c2 = arith.constant 2 : index
    %c0_9 = arith.constant 0 : index
    %7 = vector.load %arg7[%c2, %c0_9] : memref<24x128xf32, #tpu.memory_space<vmem>>, vector<18x128xf32>
    %c0_10 = arith.constant 0 : index
    %c0_11 = arith.constant 0 : index
    %c0_12 = arith.constant 0 : index
    %c0_13 = arith.constant 0 : index
    %8 = vector.load %arg2[%c0_10, %c0_11, %c0_12, %c0_13] : memref<4x7x128x128xf32, #tpu.memory_space<vmem>>, vector<1x1x128x128xf32>
    %9 = vector.shape_cast %8 : vector<1x1x128x128xf32> to vector<128x128xf32>
    %cst_14 = arith.constant dense<0.000000e+00> : vector<18x128xf32>
    %10 = tpu.matmul %5, %9, %cst_14 {dimension_numbers = #tpu.dot_dimension_numbers<[1], [0], [0], [1], [0, 0, 1, 1], [], []>} : vector<18x128xf32>, vector<128x128xf32>, vector<18x128xf32> -> vector<18x128xf32>
    %c0_15 = arith.constant 0 : index
    %c1_16 = arith.constant 1 : index
    %c0_17 = arith.constant 0 : index
    %c0_18 = arith.constant 0 : index
    %11 = vector.load %arg2[%c0_15, %c1_16, %c0_17, %c0_18] : memref<4x7x128x128xf32, #tpu.memory_space<vmem>>, vector<1x1x128x128xf32>
    %12 = vector.shape_cast %11 : vector<1x1x128x128xf32> to vector<128x128xf32>
    %cst_19 = arith.constant dense<0.000000e+00> : vector<18x128xf32>
    %13 = tpu.matmul %6, %12, %cst_19 {dimension_numbers = #tpu.dot_dimension_numbers<[1], [0], [0], [1], [0, 0, 1, 1], [], []>} : vector<18x128xf32>, vector<128x128xf32>, vector<18x128xf32> -> vector<18x128xf32>
    %14 = arith.addf %10, %13 : vector<18x128xf32>
    %c0_20 = arith.constant 0 : index
    %c2_21 = arith.constant 2 : index
    %c0_22 = arith.constant 0 : index
    %c0_23 = arith.constant 0 : index
    %15 = vector.load %arg2[%c0_20, %c2_21, %c0_22, %c0_23] : memref<4x7x128x128xf32, #tpu.memory_space<vmem>>, vector<1x1x128x128xf32>
    %16 = vector.shape_cast %15 : vector<1x1x128x128xf32> to vector<128x128xf32>
    %cst_24 = arith.constant dense<0.000000e+00> : vector<18x128xf32>
    %17 = tpu.matmul %7, %16, %cst_24 {dimension_numbers = #tpu.dot_dimension_numbers<[1], [0], [0], [1], [0, 0, 1, 1], [], []>} : vector<18x128xf32>, vector<128x128xf32>, vector<18x128xf32> -> vector<18x128xf32>
    %18 = arith.addf %14, %17 : vector<18x128xf32>
    %c0_25 = arith.constant 0 : index
    %c0_26 = arith.constant 0 : index
    %c0_27 = arith.constant 0 : index
    %19 = vector.load %arg3[%c0_25, %c0_26, %c0_27] : memref<4x8x128xf32, #tpu.memory_space<vmem>>, vector<1x1x128xf32>
    %20 = vector.shape_cast %19 : vector<1x1x128xf32> to vector<1x128xf32>
    %21 = vector.broadcast %20 : vector<1x128xf32> to vector<18x128xf32>
    %22 = arith.addf %18, %21 : vector<18x128xf32>
    %cst_28 = arith.constant 0.000000e+00 : f32
    %23 = vector.broadcast %cst_28 : f32 to vector<18x128xf32>
    %24 = arith.maximumf %22, %23 : vector<18x128xf32>
    %c1_29 = arith.constant 1 : index
    %c0_30 = arith.constant 0 : index
    %25 = vector.load %arg8[%c1_29, %c0_30] : memref<24x128xf32, #tpu.memory_space<vmem>>, vector<18x128xf32>
    tpu.vector_store %arg8[%c1_29, %c0_30], %24 {strides = array<i32>} : memref<24x128xf32, #tpu.memory_space<vmem>>, vector<18x128xf32>,
    %c0_31 = arith.constant 0 : index
    %c0_32 = arith.constant 0 : index
    %26 = vector.load %arg8[%c0_31, %c0_32] : memref<24x128xf32, #tpu.memory_space<vmem>>, vector<18x128xf32>
    %c1_33 = arith.constant 1 : index
    %c0_34 = arith.constant 0 : index
    %27 = vector.load %arg8[%c1_33, %c0_34] : memref<24x128xf32, #tpu.memory_space<vmem>>, vector<18x128xf32>
    %c2_35 = arith.constant 2 : index
    %c0_36 = arith.constant 0 : index
    %28 = vector.load %arg8[%c2_35, %c0_36] : memref<24x128xf32, #tpu.memory_space<vmem>>, vector<18x128xf32>
    %c0_37 = arith.constant 0 : index
    %c3 = arith.constant 3 : index
    %c0_38 = arith.constant 0 : index
    %c0_39 = arith.constant 0 : index
    %29 = vector.load %arg2[%c0_37, %c3, %c0_38, %c0_39] : memref<4x7x128x128xf32, #tpu.memory_space<vmem>>, vector<1x1x128x128xf32>
    %30 = vector.shape_cast %29 : vector<1x1x128x128xf32> to vector<128x128xf32>
    %cst_40 = arith.constant dense<0.000000e+00> : vector<18x128xf32>
    %31 = tpu.matmul %26, %30, %cst_40 {dimension_numbers = #tpu.dot_dimension_numbers<[1], [0], [0], [1], [0, 0, 1, 1], [], []>} : vector<18x128xf32>, vector<128x128xf32>, vector<18x128xf32> -> vector<18x128xf32>
    %c0_41 = arith.constant 0 : index
    %c4 = arith.constant 4 : index
    %c0_42 = arith.constant 0 : index
    %c0_43 = arith.constant 0 : index
    %32 = vector.load %arg2[%c0_41, %c4, %c0_42, %c0_43] : memref<4x7x128x128xf32, #tpu.memory_space<vmem>>, vector<1x1x128x128xf32>
    %33 = vector.shape_cast %32 : vector<1x1x128x128xf32> to vector<128x128xf32>
    %cst_44 = arith.constant dense<0.000000e+00> : vector<18x128xf32>
    %34 = tpu.matmul %27, %33, %cst_44 {dimension_numbers = #tpu.dot_dimension_numbers<[1], [0], [0], [1], [0, 0, 1, 1], [], []>} : vector<18x128xf32>, vector<128x128xf32>, vector<18x128xf32> -> vector<18x128xf32>
    %35 = arith.addf %31, %34 : vector<18x128xf32>
    %c0_45 = arith.constant 0 : index
    %c5 = arith.constant 5 : index
    %c0_46 = arith.constant 0 : index
    %c0_47 = arith.constant 0 : index
    %36 = vector.load %arg2[%c0_45, %c5, %c0_46, %c0_47] : memref<4x7x128x128xf32, #tpu.memory_space<vmem>>, vector<1x1x128x128xf32>
    %37 = vector.shape_cast %36 : vector<1x1x128x128xf32> to vector<128x128xf32>
    %cst_48 = arith.constant dense<0.000000e+00> : vector<18x128xf32>
    %38 = tpu.matmul %28, %37, %cst_48 {dimension_numbers = #tpu.dot_dimension_numbers<[1], [0], [0], [1], [0, 0, 1, 1], [], []>} : vector<18x128xf32>, vector<128x128xf32>, vector<18x128xf32> -> vector<18x128xf32>
    %39 = arith.addf %35, %38 : vector<18x128xf32>
    %c0_49 = arith.constant 0 : index
    %c1_50 = arith.constant 1 : index
    %c0_51 = arith.constant 0 : index
    %40 = vector.load %arg3[%c0_49, %c1_50, %c0_51] : memref<4x8x128xf32, #tpu.memory_space<vmem>>, vector<1x1x128xf32>
    %41 = vector.shape_cast %40 : vector<1x1x128xf32> to vector<1x128xf32>
    %42 = vector.broadcast %41 : vector<1x128xf32> to vector<18x128xf32>
    %43 = arith.addf %39, %42 : vector<18x128xf32>
    %c1_52 = arith.constant 1 : index
    %c0_53 = arith.constant 0 : index
    %44 = vector.load %arg7[%c1_52, %c0_53] : memref<24x128xf32, #tpu.memory_space<vmem>>, vector<18x128xf32>
    %c0_54 = arith.constant 0 : index
    %c6 = arith.constant 6 : index
    %c0_55 = arith.constant 0 : index
    %c0_56 = arith.constant 0 : index
    %45 = vector.load %arg2[%c0_54, %c6, %c0_55, %c0_56] : memref<4x7x128x128xf32, #tpu.memory_space<vmem>>, vector<1x1x128x128xf32>
    %46 = vector.shape_cast %45 : vector<1x1x128x128xf32> to vector<128x128xf32>
    %cst_57 = arith.constant dense<0.000000e+00> : vector<18x128xf32>
    %47 = tpu.matmul %44, %46, %cst_57 {dimension_numbers = #tpu.dot_dimension_numbers<[1], [0], [0], [1], [0, 0, 1, 1], [], []>} : vector<18x128xf32>, vector<128x128xf32>, vector<18x128xf32> -> vector<18x128xf32>
    %c0_58 = arith.constant 0 : index
    %c2_59 = arith.constant 2 : index
    %c0_60 = arith.constant 0 : index
    %48 = vector.load %arg3[%c0_58, %c2_59, %c0_60] : memref<4x8x128xf32, #tpu.memory_space<vmem>>, vector<1x1x128xf32>
    %49 = vector.shape_cast %48 : vector<1x1x128xf32> to vector<1x128xf32>
    %50 = vector.broadcast %49 : vector<1x128xf32> to vector<18x128xf32>
    %51 = arith.addf %47, %50 : vector<18x128xf32>
    %52 = arith.addf %43, %51 : vector<18x128xf32>
    %cst_61 = arith.constant 0.000000e+00 : f32
    %53 = vector.broadcast %cst_61 : f32 to vector<18x128xf32>
    %54 = arith.maximumf %52, %53 : vector<18x128xf32>
    %c1_62 = arith.constant 1 : index
    %c0_63 = arith.constant 0 : index
    %55 = vector.load %arg7[%c1_62, %c0_63] : memref<24x128xf32, #tpu.memory_space<vmem>>, vector<18x128xf32>
    tpu.vector_store %arg7[%c1_62, %c0_63], %54 {strides = array<i32>} : memref<24x128xf32, #tpu.memory_space<vmem>>, vector<18x128xf32>,
    %c0_64 = arith.constant 0 : index
    %c0_65 = arith.constant 0 : index
    %56 = vector.load %arg7[%c0_64, %c0_65] : memref<24x128xf32, #tpu.memory_space<vmem>>, vector<18x128xf32>
    %c1_66 = arith.constant 1 : index
    %c0_67 = arith.constant 0 : index
    %57 = vector.load %arg7[%c1_66, %c0_67] : memref<24x128xf32, #tpu.memory_space<vmem>>, vector<18x128xf32>
    %c2_68 = arith.constant 2 : index
    %c0_69 = arith.constant 0 : index
    %58 = vector.load %arg7[%c2_68, %c0_69] : memref<24x128xf32, #tpu.memory_space<vmem>>, vector<18x128xf32>
    %c1_70 = arith.constant 1 : index
    %c0_71 = arith.constant 0 : index
    %c0_72 = arith.constant 0 : index
    %c0_73 = arith.constant 0 : index
    %59 = vector.load %arg2[%c1_70, %c0_71, %c0_72, %c0_73] : memref<4x7x128x128xf32, #tpu.memory_space<vmem>>, vector<1x1x128x128xf32>
    %60 = vector.shape_cast %59 : vector<1x1x128x128xf32> to vector<128x128xf32>
    %cst_74 = arith.constant dense<0.000000e+00> : vector<18x128xf32>
    %61 = tpu.matmul %56, %60, %cst_74 {dimension_numbers = #tpu.dot_dimension_numbers<[1], [0], [0], [1], [0, 0, 1, 1], [], []>} : vector<18x128xf32>, vector<128x128xf32>, vector<18x128xf32> -> vector<18x128xf32>
    %c1_75 = arith.constant 1 : index
    %c1_76 = arith.constant 1 : index
    %c0_77 = arith.constant 0 : index
    %c0_78 = arith.constant 0 : index
    %62 = vector.load %arg2[%c1_75, %c1_76, %c0_77, %c0_78] : memref<4x7x128x128xf32, #tpu.memory_space<vmem>>, vector<1x1x128x128xf32>
    %63 = vector.shape_cast %62 : vector<1x1x128x128xf32> to vector<128x128xf32>
    %cst_79 = arith.constant dense<0.000000e+00> : vector<18x128xf32>
    %64 = tpu.matmul %57, %63, %cst_79 {dimension_numbers = #tpu.dot_dimension_numbers<[1], [0], [0], [1], [0, 0, 1, 1], [], []>} : vector<18x128xf32>, vector<128x128xf32>, vector<18x128xf32> -> vector<18x128xf32>
    %65 = arith.addf %61, %64 : vector<18x128xf32>
    %c1_80 = arith.constant 1 : index
    %c2_81 = arith.constant 2 : index
    %c0_82 = arith.constant 0 : index
    %c0_83 = arith.constant 0 : index
    %66 = vector.load %arg2[%c1_80, %c2_81, %c0_82, %c0_83] : memref<4x7x128x128xf32, #tpu.memory_space<vmem>>, vector<1x1x128x128xf32>
    %67 = vector.shape_cast %66 : vector<1x1x128x128xf32> to vector<128x128xf32>
    %cst_84 = arith.constant dense<0.000000e+00> : vector<18x128xf32>
    %68 = tpu.matmul %58, %67, %cst_84 {dimension_numbers = #tpu.dot_dimension_numbers<[1], [0], [0], [1], [0, 0, 1, 1], [], []>} : vector<18x128xf32>, vector<128x128xf32>, vector<18x128xf32> -> vector<18x128xf32>
    %69 = arith.addf %65, %68 : vector<18x128xf32>
    %c1_85 = arith.constant 1 : index
    %c0_86 = arith.constant 0 : index
    %c0_87 = arith.constant 0 : index
    %70 = vector.load %arg3[%c1_85, %c0_86, %c0_87] : memref<4x8x128xf32, #tpu.memory_space<vmem>>, vector<1x1x128xf32>
    %71 = vector.shape_cast %70 : vector<1x1x128xf32> to vector<1x128xf32>
    %72 = vector.broadcast %71 : vector<1x128xf32> to vector<18x128xf32>
    %73 = arith.addf %69, %72 : vector<18x128xf32>
    %cst_88 = arith.constant 0.000000e+00 : f32
    %74 = vector.broadcast %cst_88 : f32 to vector<18x128xf32>
    %75 = arith.maximumf %73, %74 : vector<18x128xf32>
    %c1_89 = arith.constant 1 : index
    %c0_90 = arith.constant 0 : index
    %76 = vector.load %arg8[%c1_89, %c0_90] : memref<24x128xf32, #tpu.memory_space<vmem>>, vector<18x128xf32>
    tpu.vector_store %arg8[%c1_89, %c0_90], %75 {strides = array<i32>} : memref<24x128xf32, #tpu.memory_space<vmem>>, vector<18x128xf32>,
    %c0_91 = arith.constant 0 : index
    %c0_92 = arith.constant 0 : index
    %77 = vector.load %arg8[%c0_91, %c0_92] : memref<24x128xf32, #tpu.memory_space<vmem>>, vector<18x128xf32>
    %c1_93 = arith.constant 1 : index
    %c0_94 = arith.constant 0 : index
    %78 = vector.load %arg8[%c1_93, %c0_94] : memref<24x128xf32, #tpu.memory_space<vmem>>, vector<18x128xf32>
    %c2_95 = arith.constant 2 : index
    %c0_96 = arith.constant 0 : index
    %79 = vector.load %arg8[%c2_95, %c0_96] : memref<24x128xf32, #tpu.memory_space<vmem>>, vector<18x128xf32>
    %c1_97 = arith.constant 1 : index
    %c3_98 = arith.constant 3 : index
    %c0_99 = arith.constant 0 : index
    %c0_100 = arith.constant 0 : index
    %80 = vector.load %arg2[%c1_97, %c3_98, %c0_99, %c0_100] : memref<4x7x128x128xf32, #tpu.memory_space<vmem>>, vector<1x1x128x128xf32>
    %81 = vector.shape_cast %80 : vector<1x1x128x128xf32> to vector<128x128xf32>
    %cst_101 = arith.constant dense<0.000000e+00> : vector<18x128xf32>
    %82 = tpu.matmul %77, %81, %cst_101 {dimension_numbers = #tpu.dot_dimension_numbers<[1], [0], [0], [1], [0, 0, 1, 1], [], []>} : vector<18x128xf32>, vector<128x128xf32>, vector<18x128xf32> -> vector<18x128xf32>
    %c1_102 = arith.constant 1 : index
    %c4_103 = arith.constant 4 : index
    %c0_104 = arith.constant 0 : index
    %c0_105 = arith.constant 0 : index
    %83 = vector.load %arg2[%c1_102, %c4_103, %c0_104, %c0_105] : memref<4x7x128x128xf32, #tpu.memory_space<vmem>>, vector<1x1x128x128xf32>
    %84 = vector.shape_cast %83 : vector<1x1x128x128xf32> to vector<128x128xf32>
    %cst_106 = arith.constant dense<0.000000e+00> : vector<18x128xf32>
    %85 = tpu.matmul %78, %84, %cst_106 {dimension_numbers = #tpu.dot_dimension_numbers<[1], [0], [0], [1], [0, 0, 1, 1], [], []>} : vector<18x128xf32>, vector<128x128xf32>, vector<18x128xf32> -> vector<18x128xf32>
    %86 = arith.addf %82, %85 : vector<18x128xf32>
    %c1_107 = arith.constant 1 : index
    %c5_108 = arith.constant 5 : index
    %c0_109 = arith.constant 0 : index
    %c0_110 = arith.constant 0 : index
    %87 = vector.load %arg2[%c1_107, %c5_108, %c0_109, %c0_110] : memref<4x7x128x128xf32, #tpu.memory_space<vmem>>, vector<1x1x128x128xf32>
    %88 = vector.shape_cast %87 : vector<1x1x128x128xf32> to vector<128x128xf32>
    %cst_111 = arith.constant dense<0.000000e+00> : vector<18x128xf32>
    %89 = tpu.matmul %79, %88, %cst_111 {dimension_numbers = #tpu.dot_dimension_numbers<[1], [0], [0], [1], [0, 0, 1, 1], [], []>} : vector<18x128xf32>, vector<128x128xf32>, vector<18x128xf32> -> vector<18x128xf32>
    %90 = arith.addf %86, %89 : vector<18x128xf32>
    %c1_112 = arith.constant 1 : index
    %c1_113 = arith.constant 1 : index
    %c0_114 = arith.constant 0 : index
    %91 = vector.load %arg3[%c1_112, %c1_113, %c0_114] : memref<4x8x128xf32, #tpu.memory_space<vmem>>, vector<1x1x128xf32>
    %92 = vector.shape_cast %91 : vector<1x1x128xf32> to vector<1x128xf32>
    %93 = vector.broadcast %92 : vector<1x128xf32> to vector<18x128xf32>
    %94 = arith.addf %90, %93 : vector<18x128xf32>
    %c1_115 = arith.constant 1 : index
    %c0_116 = arith.constant 0 : index
    %95 = vector.load %arg7[%c1_115, %c0_116] : memref<24x128xf32, #tpu.memory_space<vmem>>, vector<18x128xf32>
    %c1_117 = arith.constant 1 : index
    %c6_118 = arith.constant 6 : index
    %c0_119 = arith.constant 0 : index
    %c0_120 = arith.constant 0 : index
    %96 = vector.load %arg2[%c1_117, %c6_118, %c0_119, %c0_120] : memref<4x7x128x128xf32, #tpu.memory_space<vmem>>, vector<1x1x128x128xf32>
    %97 = vector.shape_cast %96 : vector<1x1x128x128xf32> to vector<128x128xf32>
    %cst_121 = arith.constant dense<0.000000e+00> : vector<18x128xf32>
    %98 = tpu.matmul %95, %97, %cst_121 {dimension_numbers = #tpu.dot_dimension_numbers<[1], [0], [0], [1], [0, 0, 1, 1], [], []>} : vector<18x128xf32>, vector<128x128xf32>, vector<18x128xf32> -> vector<18x128xf32>
    %c1_122 = arith.constant 1 : index
    %c2_123 = arith.constant 2 : index
    %c0_124 = arith.constant 0 : index
    %99 = vector.load %arg3[%c1_122, %c2_123, %c0_124] : memref<4x8x128xf32, #tpu.memory_space<vmem>>, vector<1x1x128xf32>
    %100 = vector.shape_cast %99 : vector<1x1x128xf32> to vector<1x128xf32>
    %101 = vector.broadcast %100 : vector<1x128xf32> to vector<18x128xf32>
    %102 = arith.addf %98, %101 : vector<18x128xf32>
    %103 = arith.addf %94, %102 : vector<18x128xf32>
    %cst_125 = arith.constant 0.000000e+00 : f32
    %104 = vector.broadcast %cst_125 : f32 to vector<18x128xf32>
    %105 = arith.maximumf %103, %104 : vector<18x128xf32>
    %c1_126 = arith.constant 1 : index
    %c0_127 = arith.constant 0 : index
    %106 = vector.load %arg7[%c1_126, %c0_127] : memref<24x128xf32, #tpu.memory_space<vmem>>, vector<18x128xf32>
    tpu.vector_store %arg7[%c1_126, %c0_127], %105 {strides = array<i32>} : memref<24x128xf32, #tpu.memory_space<vmem>>, vector<18x128xf32>,
    %c0_128 = arith.constant 0 : index
    %c0_129 = arith.constant 0 : index
    %107 = vector.load %arg7[%c0_128, %c0_129] : memref<24x128xf32, #tpu.memory_space<vmem>>, vector<18x128xf32>
    %c1_130 = arith.constant 1 : index
    %c0_131 = arith.constant 0 : index
    %108 = vector.load %arg7[%c1_130, %c0_131] : memref<24x128xf32, #tpu.memory_space<vmem>>, vector<18x128xf32>
    %c2_132 = arith.constant 2 : index
    %c0_133 = arith.constant 0 : index
    %109 = vector.load %arg7[%c2_132, %c0_133] : memref<24x128xf32, #tpu.memory_space<vmem>>, vector<18x128xf32>
    %c2_134 = arith.constant 2 : index
    %c0_135 = arith.constant 0 : index
    %c0_136 = arith.constant 0 : index
    %c0_137 = arith.constant 0 : index
    %110 = vector.load %arg2[%c2_134, %c0_135, %c0_136, %c0_137] : memref<4x7x128x128xf32, #tpu.memory_space<vmem>>, vector<1x1x128x128xf32>
    %111 = vector.shape_cast %110 : vector<1x1x128x128xf32> to vector<128x128xf32>
    %cst_138 = arith.constant dense<0.000000e+00> : vector<18x128xf32>
    %112 = tpu.matmul %107, %111, %cst_138 {dimension_numbers = #tpu.dot_dimension_numbers<[1], [0], [0], [1], [0, 0, 1, 1], [], []>} : vector<18x128xf32>, vector<128x128xf32>, vector<18x128xf32> -> vector<18x128xf32>
    %c2_139 = arith.constant 2 : index
    %c1_140 = arith.constant 1 : index
    %c0_141 = arith.constant 0 : index
    %c0_142 = arith.constant 0 : index
    %113 = vector.load %arg2[%c2_139, %c1_140, %c0_141, %c0_142] : memref<4x7x128x128xf32, #tpu.memory_space<vmem>>, vector<1x1x128x128xf32>
    %114 = vector.shape_cast %113 : vector<1x1x128x128xf32> to vector<128x128xf32>
    %cst_143 = arith.constant dense<0.000000e+00> : vector<18x128xf32>
    %115 = tpu.matmul %108, %114, %cst_143 {dimension_numbers = #tpu.dot_dimension_numbers<[1], [0], [0], [1], [0, 0, 1, 1], [], []>} : vector<18x128xf32>, vector<128x128xf32>, vector<18x128xf32> -> vector<18x128xf32>
    %116 = arith.addf %112, %115 : vector<18x128xf32>
    %c2_144 = arith.constant 2 : index
    %c2_145 = arith.constant 2 : index
    %c0_146 = arith.constant 0 : index
    %c0_147 = arith.constant 0 : index
    %117 = vector.load %arg2[%c2_144, %c2_145, %c0_146, %c0_147] : memref<4x7x128x128xf32, #tpu.memory_space<vmem>>, vector<1x1x128x128xf32>
    %118 = vector.shape_cast %117 : vector<1x1x128x128xf32> to vector<128x128xf32>
    %cst_148 = arith.constant dense<0.000000e+00> : vector<18x128xf32>
    %119 = tpu.matmul %109, %118, %cst_148 {dimension_numbers = #tpu.dot_dimension_numbers<[1], [0], [0], [1], [0, 0, 1, 1], [], []>} : vector<18x128xf32>, vector<128x128xf32>, vector<18x128xf32> -> vector<18x128xf32>
    %120 = arith.addf %116, %119 : vector<18x128xf32>
    %c2_149 = arith.constant 2 : index
    %c0_150 = arith.constant 0 : index
    %c0_151 = arith.constant 0 : index
    %121 = vector.load %arg3[%c2_149, %c0_150, %c0_151] : memref<4x8x128xf32, #tpu.memory_space<vmem>>, vector<1x1x128xf32>
    %122 = vector.shape_cast %121 : vector<1x1x128xf32> to vector<1x128xf32>
    %123 = vector.broadcast %122 : vector<1x128xf32> to vector<18x128xf32>
    %124 = arith.addf %120, %123 : vector<18x128xf32>
    %cst_152 = arith.constant 0.000000e+00 : f32
    %125 = vector.broadcast %cst_152 : f32 to vector<18x128xf32>
    %126 = arith.maximumf %124, %125 : vector<18x128xf32>
    %c1_153 = arith.constant 1 : index
    %c0_154 = arith.constant 0 : index
    %127 = vector.load %arg8[%c1_153, %c0_154] : memref<24x128xf32, #tpu.memory_space<vmem>>, vector<18x128xf32>
    tpu.vector_store %arg8[%c1_153, %c0_154], %126 {strides = array<i32>} : memref<24x128xf32, #tpu.memory_space<vmem>>, vector<18x128xf32>,
    %c0_155 = arith.constant 0 : index
    %c0_156 = arith.constant 0 : index
    %128 = vector.load %arg8[%c0_155, %c0_156] : memref<24x128xf32, #tpu.memory_space<vmem>>, vector<18x128xf32>
    %c1_157 = arith.constant 1 : index
    %c0_158 = arith.constant 0 : index
    %129 = vector.load %arg8[%c1_157, %c0_158] : memref<24x128xf32, #tpu.memory_space<vmem>>, vector<18x128xf32>
    %c2_159 = arith.constant 2 : index
    %c0_160 = arith.constant 0 : index
    %130 = vector.load %arg8[%c2_159, %c0_160] : memref<24x128xf32, #tpu.memory_space<vmem>>, vector<18x128xf32>
    %c2_161 = arith.constant 2 : index
    %c3_162 = arith.constant 3 : index
    %c0_163 = arith.constant 0 : index
    %c0_164 = arith.constant 0 : index
    %131 = vector.load %arg2[%c2_161, %c3_162, %c0_163, %c0_164] : memref<4x7x128x128xf32, #tpu.memory_space<vmem>>, vector<1x1x128x128xf32>
    %132 = vector.shape_cast %131 : vector<1x1x128x128xf32> to vector<128x128xf32>
    %cst_165 = arith.constant dense<0.000000e+00> : vector<18x128xf32>
    %133 = tpu.matmul %128, %132, %cst_165 {dimension_numbers = #tpu.dot_dimension_numbers<[1], [0], [0], [1], [0, 0, 1, 1], [], []>} : vector<18x128xf32>, vector<128x128xf32>, vector<18x128xf32> -> vector<18x128xf32>
    %c2_166 = arith.constant 2 : index
    %c4_167 = arith.constant 4 : index
    %c0_168 = arith.constant 0 : index
    %c0_169 = arith.constant 0 : index
    %134 = vector.load %arg2[%c2_166, %c4_167, %c0_168, %c0_169] : memref<4x7x128x128xf32, #tpu.memory_space<vmem>>, vector<1x1x128x128xf32>
    %135 = vector.shape_cast %134 : vector<1x1x128x128xf32> to vector<128x128xf32>
    %cst_170 = arith.constant dense<0.000000e+00> : vector<18x128xf32>
    %136 = tpu.matmul %129, %135, %cst_170 {dimension_numbers = #tpu.dot_dimension_numbers<[1], [0], [0], [1], [0, 0, 1, 1], [], []>} : vector<18x128xf32>, vector<128x128xf32>, vector<18x128xf32> -> vector<18x128xf32>
    %137 = arith.addf %133, %136 : vector<18x128xf32>
    %c2_171 = arith.constant 2 : index
    %c5_172 = arith.constant 5 : index
    %c0_173 = arith.constant 0 : index
    %c0_174 = arith.constant 0 : index
    %138 = vector.load %arg2[%c2_171, %c5_172, %c0_173, %c0_174] : memref<4x7x128x128xf32, #tpu.memory_space<vmem>>, vector<1x1x128x128xf32>
    %139 = vector.shape_cast %138 : vector<1x1x128x128xf32> to vector<128x128xf32>
    %cst_175 = arith.constant dense<0.000000e+00> : vector<18x128xf32>
    %140 = tpu.matmul %130, %139, %cst_175 {dimension_numbers = #tpu.dot_dimension_numbers<[1], [0], [0], [1], [0, 0, 1, 1], [], []>} : vector<18x128xf32>, vector<128x128xf32>, vector<18x128xf32> -> vector<18x128xf32>
    %141 = arith.addf %137, %140 : vector<18x128xf32>
    %c2_176 = arith.constant 2 : index
    %c1_177 = arith.constant 1 : index
    %c0_178 = arith.constant 0 : index
    %142 = vector.load %arg3[%c2_176, %c1_177, %c0_178] : memref<4x8x128xf32, #tpu.memory_space<vmem>>, vector<1x1x128xf32>
    %143 = vector.shape_cast %142 : vector<1x1x128xf32> to vector<1x128xf32>
    %144 = vector.broadcast %143 : vector<1x128xf32> to vector<18x128xf32>
    %145 = arith.addf %141, %144 : vector<18x128xf32>
    %c1_179 = arith.constant 1 : index
    %c0_180 = arith.constant 0 : index
    %146 = vector.load %arg7[%c1_179, %c0_180] : memref<24x128xf32, #tpu.memory_space<vmem>>, vector<18x128xf32>
    %c2_181 = arith.constant 2 : index
    %c6_182 = arith.constant 6 : index
    %c0_183 = arith.constant 0 : index
    %c0_184 = arith.constant 0 : index
    %147 = vector.load %arg2[%c2_181, %c6_182, %c0_183, %c0_184] : memref<4x7x128x128xf32, #tpu.memory_space<vmem>>, vector<1x1x128x128xf32>
    %148 = vector.shape_cast %147 : vector<1x1x128x128xf32> to vector<128x128xf32>
    %cst_185 = arith.constant dense<0.000000e+00> : vector<18x128xf32>
    %149 = tpu.matmul %146, %148, %cst_185 {dimension_numbers = #tpu.dot_dimension_numbers<[1], [0], [0], [1], [0, 0, 1, 1], [], []>} : vector<18x128xf32>, vector<128x128xf32>, vector<18x128xf32> -> vector<18x128xf32>
    %c2_186 = arith.constant 2 : index
    %c2_187 = arith.constant 2 : index
    %c0_188 = arith.constant 0 : index
    %150 = vector.load %arg3[%c2_186, %c2_187, %c0_188] : memref<4x8x128xf32, #tpu.memory_space<vmem>>, vector<1x1x128xf32>
    %151 = vector.shape_cast %150 : vector<1x1x128xf32> to vector<1x128xf32>
    %152 = vector.broadcast %151 : vector<1x128xf32> to vector<18x128xf32>
    %153 = arith.addf %149, %152 : vector<18x128xf32>
    %154 = arith.addf %145, %153 : vector<18x128xf32>
    %cst_189 = arith.constant 0.000000e+00 : f32
    %155 = vector.broadcast %cst_189 : f32 to vector<18x128xf32>
    %156 = arith.maximumf %154, %155 : vector<18x128xf32>
    %c1_190 = arith.constant 1 : index
    %c0_191 = arith.constant 0 : index
    %157 = vector.load %arg7[%c1_190, %c0_191] : memref<24x128xf32, #tpu.memory_space<vmem>>, vector<18x128xf32>
    tpu.vector_store %arg7[%c1_190, %c0_191], %156 {strides = array<i32>} : memref<24x128xf32, #tpu.memory_space<vmem>>, vector<18x128xf32>,
    %c0_192 = arith.constant 0 : index
    %c0_193 = arith.constant 0 : index
    %158 = vector.load %arg7[%c0_192, %c0_193] : memref<24x128xf32, #tpu.memory_space<vmem>>, vector<18x128xf32>
    %c1_194 = arith.constant 1 : index
    %c0_195 = arith.constant 0 : index
    %159 = vector.load %arg7[%c1_194, %c0_195] : memref<24x128xf32, #tpu.memory_space<vmem>>, vector<18x128xf32>
    %c2_196 = arith.constant 2 : index
    %c0_197 = arith.constant 0 : index
    %160 = vector.load %arg7[%c2_196, %c0_197] : memref<24x128xf32, #tpu.memory_space<vmem>>, vector<18x128xf32>
    %c3_198 = arith.constant 3 : index
    %c0_199 = arith.constant 0 : index
    %c0_200 = arith.constant 0 : index
    %c0_201 = arith.constant 0 : index
    %161 = vector.load %arg2[%c3_198, %c0_199, %c0_200, %c0_201] : memref<4x7x128x128xf32, #tpu.memory_space<vmem>>, vector<1x1x128x128xf32>
    %162 = vector.shape_cast %161 : vector<1x1x128x128xf32> to vector<128x128xf32>
    %cst_202 = arith.constant dense<0.000000e+00> : vector<18x128xf32>
    %163 = tpu.matmul %158, %162, %cst_202 {dimension_numbers = #tpu.dot_dimension_numbers<[1], [0], [0], [1], [0, 0, 1, 1], [], []>} : vector<18x128xf32>, vector<128x128xf32>, vector<18x128xf32> -> vector<18x128xf32>
    %c3_203 = arith.constant 3 : index
    %c1_204 = arith.constant 1 : index
    %c0_205 = arith.constant 0 : index
    %c0_206 = arith.constant 0 : index
    %164 = vector.load %arg2[%c3_203, %c1_204, %c0_205, %c0_206] : memref<4x7x128x128xf32, #tpu.memory_space<vmem>>, vector<1x1x128x128xf32>
    %165 = vector.shape_cast %164 : vector<1x1x128x128xf32> to vector<128x128xf32>
    %cst_207 = arith.constant dense<0.000000e+00> : vector<18x128xf32>
    %166 = tpu.matmul %159, %165, %cst_207 {dimension_numbers = #tpu.dot_dimension_numbers<[1], [0], [0], [1], [0, 0, 1, 1], [], []>} : vector<18x128xf32>, vector<128x128xf32>, vector<18x128xf32> -> vector<18x128xf32>
    %167 = arith.addf %163, %166 : vector<18x128xf32>
    %c3_208 = arith.constant 3 : index
    %c2_209 = arith.constant 2 : index
    %c0_210 = arith.constant 0 : index
    %c0_211 = arith.constant 0 : index
    %168 = vector.load %arg2[%c3_208, %c2_209, %c0_210, %c0_211] : memref<4x7x128x128xf32, #tpu.memory_space<vmem>>, vector<1x1x128x128xf32>
    %169 = vector.shape_cast %168 : vector<1x1x128x128xf32> to vector<128x128xf32>
    %cst_212 = arith.constant dense<0.000000e+00> : vector<18x128xf32>
    %170 = tpu.matmul %160, %169, %cst_212 {dimension_numbers = #tpu.dot_dimension_numbers<[1], [0], [0], [1], [0, 0, 1, 1], [], []>} : vector<18x128xf32>, vector<128x128xf32>, vector<18x128xf32> -> vector<18x128xf32>
    %171 = arith.addf %167, %170 : vector<18x128xf32>
    %c3_213 = arith.constant 3 : index
    %c0_214 = arith.constant 0 : index
    %c0_215 = arith.constant 0 : index
    %172 = vector.load %arg3[%c3_213, %c0_214, %c0_215] : memref<4x8x128xf32, #tpu.memory_space<vmem>>, vector<1x1x128xf32>
    %173 = vector.shape_cast %172 : vector<1x1x128xf32> to vector<1x128xf32>
    %174 = vector.broadcast %173 : vector<1x128xf32> to vector<18x128xf32>
    %175 = arith.addf %171, %174 : vector<18x128xf32>
    %cst_216 = arith.constant 0.000000e+00 : f32
    %176 = vector.broadcast %cst_216 : f32 to vector<18x128xf32>
    %177 = arith.maximumf %175, %176 : vector<18x128xf32>
    %c1_217 = arith.constant 1 : index
    %c0_218 = arith.constant 0 : index
    %178 = vector.load %arg8[%c1_217, %c0_218] : memref<24x128xf32, #tpu.memory_space<vmem>>, vector<18x128xf32>
    tpu.vector_store %arg8[%c1_217, %c0_218], %177 {strides = array<i32>} : memref<24x128xf32, #tpu.memory_space<vmem>>, vector<18x128xf32>,
    %c0_219 = arith.constant 0 : index
    %c0_220 = arith.constant 0 : index
    %179 = vector.load %arg8[%c0_219, %c0_220] : memref<24x128xf32, #tpu.memory_space<vmem>>, vector<18x128xf32>
    %c1_221 = arith.constant 1 : index
    %c0_222 = arith.constant 0 : index
    %180 = vector.load %arg8[%c1_221, %c0_222] : memref<24x128xf32, #tpu.memory_space<vmem>>, vector<18x128xf32>
    %c2_223 = arith.constant 2 : index
    %c0_224 = arith.constant 0 : index
    %181 = vector.load %arg8[%c2_223, %c0_224] : memref<24x128xf32, #tpu.memory_space<vmem>>, vector<18x128xf32>
    %c3_225 = arith.constant 3 : index
    %c3_226 = arith.constant 3 : index
    %c0_227 = arith.constant 0 : index
    %c0_228 = arith.constant 0 : index
    %182 = vector.load %arg2[%c3_225, %c3_226, %c0_227, %c0_228] : memref<4x7x128x128xf32, #tpu.memory_space<vmem>>, vector<1x1x128x128xf32>
    %183 = vector.shape_cast %182 : vector<1x1x128x128xf32> to vector<128x128xf32>
    %cst_229 = arith.constant dense<0.000000e+00> : vector<18x128xf32>
    %184 = tpu.matmul %179, %183, %cst_229 {dimension_numbers = #tpu.dot_dimension_numbers<[1], [0], [0], [1], [0, 0, 1, 1], [], []>} : vector<18x128xf32>, vector<128x128xf32>, vector<18x128xf32> -> vector<18x128xf32>
    %c3_230 = arith.constant 3 : index
    %c4_231 = arith.constant 4 : index
    %c0_232 = arith.constant 0 : index
    %c0_233 = arith.constant 0 : index
    %185 = vector.load %arg2[%c3_230, %c4_231, %c0_232, %c0_233] : memref<4x7x128x128xf32, #tpu.memory_space<vmem>>, vector<1x1x128x128xf32>
    %186 = vector.shape_cast %185 : vector<1x1x128x128xf32> to vector<128x128xf32>
    %cst_234 = arith.constant dense<0.000000e+00> : vector<18x128xf32>
    %187 = tpu.matmul %180, %186, %cst_234 {dimension_numbers = #tpu.dot_dimension_numbers<[1], [0], [0], [1], [0, 0, 1, 1], [], []>} : vector<18x128xf32>, vector<128x128xf32>, vector<18x128xf32> -> vector<18x128xf32>
    %188 = arith.addf %184, %187 : vector<18x128xf32>
    %c3_235 = arith.constant 3 : index
    %c5_236 = arith.constant 5 : index
    %c0_237 = arith.constant 0 : index
    %c0_238 = arith.constant 0 : index
    %189 = vector.load %arg2[%c3_235, %c5_236, %c0_237, %c0_238] : memref<4x7x128x128xf32, #tpu.memory_space<vmem>>, vector<1x1x128x128xf32>
    %190 = vector.shape_cast %189 : vector<1x1x128x128xf32> to vector<128x128xf32>
    %cst_239 = arith.constant dense<0.000000e+00> : vector<18x128xf32>
    %191 = tpu.matmul %181, %190, %cst_239 {dimension_numbers = #tpu.dot_dimension_numbers<[1], [0], [0], [1], [0, 0, 1, 1], [], []>} : vector<18x128xf32>, vector<128x128xf32>, vector<18x128xf32> -> vector<18x128xf32>
    %192 = arith.addf %188, %191 : vector<18x128xf32>
    %c3_240 = arith.constant 3 : index
    %c1_241 = arith.constant 1 : index
    %c0_242 = arith.constant 0 : index
    %193 = vector.load %arg3[%c3_240, %c1_241, %c0_242] : memref<4x8x128xf32, #tpu.memory_space<vmem>>, vector<1x1x128xf32>
    %194 = vector.shape_cast %193 : vector<1x1x128xf32> to vector<1x128xf32>
    %195 = vector.broadcast %194 : vector<1x128xf32> to vector<18x128xf32>
    %196 = arith.addf %192, %195 : vector<18x128xf32>
    %c1_243 = arith.constant 1 : index
    %c0_244 = arith.constant 0 : index
    %197 = vector.load %arg7[%c1_243, %c0_244] : memref<24x128xf32, #tpu.memory_space<vmem>>, vector<18x128xf32>
    %c3_245 = arith.constant 3 : index
    %c6_246 = arith.constant 6 : index
    %c0_247 = arith.constant 0 : index
    %c0_248 = arith.constant 0 : index
    %198 = vector.load %arg2[%c3_245, %c6_246, %c0_247, %c0_248] : memref<4x7x128x128xf32, #tpu.memory_space<vmem>>, vector<1x1x128x128xf32>
    %199 = vector.shape_cast %198 : vector<1x1x128x128xf32> to vector<128x128xf32>
    %cst_249 = arith.constant dense<0.000000e+00> : vector<18x128xf32>
    %200 = tpu.matmul %197, %199, %cst_249 {dimension_numbers = #tpu.dot_dimension_numbers<[1], [0], [0], [1], [0, 0, 1, 1], [], []>} : vector<18x128xf32>, vector<128x128xf32>, vector<18x128xf32> -> vector<18x128xf32>
    %c3_250 = arith.constant 3 : index
    %c2_251 = arith.constant 2 : index
    %c0_252 = arith.constant 0 : index
    %201 = vector.load %arg3[%c3_250, %c2_251, %c0_252] : memref<4x8x128xf32, #tpu.memory_space<vmem>>, vector<1x1x128xf32>
    %202 = vector.shape_cast %201 : vector<1x1x128xf32> to vector<1x128xf32>
    %203 = vector.broadcast %202 : vector<1x128xf32> to vector<18x128xf32>
    %204 = arith.addf %200, %203 : vector<18x128xf32>
    %205 = arith.addf %196, %204 : vector<18x128xf32>
    %cst_253 = arith.constant 0.000000e+00 : f32
    %206 = vector.broadcast %cst_253 : f32 to vector<18x128xf32>
    %207 = arith.maximumf %205, %206 : vector<18x128xf32>
    %c1_254 = arith.constant 1 : index
    %c0_255 = arith.constant 0 : index
    %208 = vector.load %arg7[%c1_254, %c0_255] : memref<24x128xf32, #tpu.memory_space<vmem>>, vector<18x128xf32>
    tpu.vector_store %arg7[%c1_254, %c0_255], %207 {strides = array<i32>} : memref<24x128xf32, #tpu.memory_space<vmem>>, vector<18x128xf32>,
    %c1_256 = arith.constant 1 : index
    %c0_257 = arith.constant 0 : index
    %209 = vector.load %arg7[%c1_256, %c0_257] : memref<24x128xf32, #tpu.memory_space<vmem>>, vector<18x128xf32>
    %cst_258 = arith.constant 0.000000e+00 : f32
    %210 = vector.broadcast %cst_258 : f32 to vector<1x128xf32>
    %211 = vector.extract_strided_slice %209 {offsets = [0, 0], sizes = [1, 128], strides = [1, 1]} : vector<18x128xf32> to vector<1x128xf32>
    %212 = vector.extract_strided_slice %209 {offsets = [1, 0], sizes = [1, 128], strides = [1, 1]} : vector<18x128xf32> to vector<1x128xf32>
    %213 = arith.addf %211, %212 : vector<1x128xf32>
    %214 = vector.extract_strided_slice %209 {offsets = [2, 0], sizes = [1, 128], strides = [1, 1]} : vector<18x128xf32> to vector<1x128xf32>
    %215 = arith.addf %213, %214 : vector<1x128xf32>
    %cst_259 = arith.constant 0.333333343 : f32
    %216 = vector.broadcast %cst_259 : f32 to vector<1x128xf32>
    %217 = arith.mulf %215, %216 : vector<1x128xf32>
    %218 = vector.extract_strided_slice %209 {offsets = [3, 0], sizes = [1, 128], strides = [1, 1]} : vector<18x128xf32> to vector<1x128xf32>
    %219 = vector.extract_strided_slice %209 {offsets = [4, 0], sizes = [1, 128], strides = [1, 1]} : vector<18x128xf32> to vector<1x128xf32>
    %220 = arith.addf %218, %219 : vector<1x128xf32>
    %221 = vector.extract_strided_slice %209 {offsets = [5, 0], sizes = [1, 128], strides = [1, 1]} : vector<18x128xf32> to vector<1x128xf32>
    %222 = arith.addf %220, %221 : vector<1x128xf32>
    %cst_260 = arith.constant 0.333333343 : f32
    %223 = vector.broadcast %cst_260 : f32 to vector<1x128xf32>
    %224 = arith.mulf %222, %223 : vector<1x128xf32>
    %225 = vector.extract_strided_slice %209 {offsets = [6, 0], sizes = [1, 128], strides = [1, 1]} : vector<18x128xf32> to vector<1x128xf32>
    %226 = vector.extract_strided_slice %209 {offsets = [7, 0], sizes = [1, 128], strides = [1, 1]} : vector<18x128xf32> to vector<1x128xf32>
    %227 = arith.addf %225, %226 : vector<1x128xf32>
    %228 = vector.extract_strided_slice %209 {offsets = [8, 0], sizes = [1, 128], strides = [1, 1]} : vector<18x128xf32> to vector<1x128xf32>
    %229 = arith.addf %227, %228 : vector<1x128xf32>
    %cst_261 = arith.constant 0.333333343 : f32
    %230 = vector.broadcast %cst_261 : f32 to vector<1x128xf32>
    %231 = arith.mulf %229, %230 : vector<1x128xf32>
    %232 = arith.maximumf %217, %224 : vector<1x128xf32>
    %233 = arith.maximumf %232, %231 : vector<1x128xf32>
    %c0_262 = arith.constant 0 : index
    %c0_263 = arith.constant 0 : index
    %234 = vector.load %arg4[%c0_262, %c0_263] : memref<8x128xf32, #tpu.memory_space<vmem>>, vector<1x128xf32>
    %235 = arith.mulf %233, %234 : vector<1x128xf32>
    %236 = arith.addf %210, %235 : vector<1x128xf32>
    %237 = vector.extract_strided_slice %209 {offsets = [9, 0], sizes = [1, 128], strides = [1, 1]} : vector<18x128xf32> to vector<1x128xf32>
    %238 = vector.extract_strided_slice %209 {offsets = [10, 0], sizes = [1, 128], strides = [1, 1]} : vector<18x128xf32> to vector<1x128xf32>
    %239 = arith.addf %237, %238 : vector<1x128xf32>
    %240 = vector.extract_strided_slice %209 {offsets = [11, 0], sizes = [1, 128], strides = [1, 1]} : vector<18x128xf32> to vector<1x128xf32>
    %241 = arith.addf %239, %240 : vector<1x128xf32>
    %cst_264 = arith.constant 0.333333343 : f32
    %242 = vector.broadcast %cst_264 : f32 to vector<1x128xf32>
    %243 = arith.mulf %241, %242 : vector<1x128xf32>
    %244 = vector.extract_strided_slice %209 {offsets = [12, 0], sizes = [1, 128], strides = [1, 1]} : vector<18x128xf32> to vector<1x128xf32>
    %245 = vector.extract_strided_slice %209 {offsets = [13, 0], sizes = [1, 128], strides = [1, 1]} : vector<18x128xf32> to vector<1x128xf32>
    %246 = arith.addf %244, %245 : vector<1x128xf32>
    %247 = vector.extract_strided_slice %209 {offsets = [14, 0], sizes = [1, 128], strides = [1, 1]} : vector<18x128xf32> to vector<1x128xf32>
    %248 = arith.addf %246, %247 : vector<1x128xf32>
    %cst_265 = arith.constant 0.333333343 : f32
    %249 = vector.broadcast %cst_265 : f32 to vector<1x128xf32>
    %250 = arith.mulf %248, %249 : vector<1x128xf32>
    %251 = vector.extract_strided_slice %209 {offsets = [15, 0], sizes = [1, 128], strides = [1, 1]} : vector<18x128xf32> to vector<1x128xf32>
    %252 = vector.extract_strided_slice %209 {offsets = [16, 0], sizes = [1, 128], strides = [1, 1]} : vector<18x128xf32> to vector<1x128xf32>
    %253 = arith.addf %251, %252 : vector<1x128xf32>
    %254 = vector.extract_strided_slice %209 {offsets = [17, 0], sizes = [1, 128], strides = [1, 1]} : vector<18x128xf32> to vector<1x128xf32>
    %255 = arith.addf %253, %254 : vector<1x128xf32>
    %cst_266 = arith.constant 0.333333343 : f32
    %256 = vector.broadcast %cst_266 : f32 to vector<1x128xf32>
    %257 = arith.mulf %255, %256 : vector<1x128xf32>
    %258 = arith.maximumf %243, %250 : vector<1x128xf32>
    %259 = arith.maximumf %258, %257 : vector<1x128xf32>
    %c1_267 = arith.constant 1 : index
    %c0_268 = arith.constant 0 : index
    %260 = vector.load %arg4[%c1_267, %c0_268] : memref<8x128xf32, #tpu.memory_space<vmem>>, vector<1x128xf32>
    %261 = arith.mulf %259, %260 : vector<1x128xf32>
    %262 = arith.addf %236, %261 : vector<1x128xf32>
    %263 = vector.shape_cast %262 : vector<1x128xf32> to vector<1x1x128xf32>
    %cst_269 = arith.constant dense<0.000000e+00> : vector<1xf32>
    %264 = vector.multi_reduction <add>, %263, %cst_269 [1, 2] : vector<1x1x128xf32> to vector<1xf32>
    %265 = vector.shape_cast %264 : vector<1xf32> to vector<1x1x1xf32>
    %266 = vector.extract %265[0, 0, 0] : f32 from vector<1x1x1xf32>
    %c0_270 = arith.constant 0 : index
    %c0_271 = arith.constant 0 : index
    %267 = memref.load %arg5[%c0_270, %c0_271] : memref<1x1xf32, #tpu.memory_space<smem>>
    %268 = arith.addf %266, %267 : f32
    %269 = vector.broadcast %268 : f32 to vector<1x1x128xf32>
    %c0_272 = arith.constant 0 : index
    %c0_273 = arith.constant 0 : index
    %c0_274 = arith.constant 0 : index
    %270 = vector.load %arg6[%c0_272, %c0_273, %c0_274] : memref<1x1x128xf32, #tpu.memory_space<vmem>>, vector<1x1x128xf32>
    tpu.vector_store %arg6[%c0_272, %c0_273, %c0_274], %269 {strides = array<i32>} : memref<1x1x128xf32, #tpu.memory_space<vmem>>, vector<1x1x128xf32>,
    return
  }
  func.func @transform_0(%arg0: i32) -> (i32, i32, i32) {
    %c0_i32 = arith.constant 0 : i32
    %c0_i32_0 = arith.constant 0 : i32
    %c0_i32_1 = arith.constant 0 : i32
    return %arg0, %c0_i32, %c0_i32_0 : i32, i32, i32
  }
  func.func @transform_1(%arg0: i32) -> (i32, i32, i32, i32) {
    %c0_i32 = arith.constant 0 : i32
    %c0_i32_0 = arith.constant 0 : i32
    %c0_i32_1 = arith.constant 0 : i32
    %c0_i32_2 = arith.constant 0 : i32
    %c0_i32_3 = arith.constant 0 : i32
    return %c0_i32, %c0_i32_0, %c0_i32_1, %c0_i32_2 : i32, i32, i32, i32
  }
  func.func @transform_2(%arg0: i32) -> (i32, i32, i32) {
    %c0_i32 = arith.constant 0 : i32
    %c0_i32_0 = arith.constant 0 : i32
    %c0_i32_1 = arith.constant 0 : i32
    %c0_i32_2 = arith.constant 0 : i32
    return %c0_i32, %c0_i32_0, %c0_i32_1 : i32, i32, i32
  }
  func.func @transform_3(%arg0: i32) -> (i32, i32) {
    %c0_i32 = arith.constant 0 : i32
    %c0_i32_0 = arith.constant 0 : i32
    %c0_i32_1 = arith.constant 0 : i32
    return %c0_i32, %c0_i32_0 : i32, i32
  }
  func.func @transform_4(%arg0: i32) -> (i32, i32) {
    %c0_i32 = arith.constant 0 : i32
    %c0_i32_0 = arith.constant 0 : i32
    %c0_i32_1 = arith.constant 0 : i32
    return %c0_i32, %c0_i32_0 : i32, i32
  }
  func.func @transform_5(%arg0: i32) -> (i32, i32, i32) {
    %c0_i32 = arith.constant 0 : i32
    %c0_i32_0 = arith.constant 0 : i32
    %c0_i32_1 = arith.constant 0 : i32
    return %arg0, %c0_i32, %c0_i32_0 : i32, i32, i32
  }
}

</mosaic_0001>

<llo_original>
// kernel: cnn_forward.1
$region0: #{cnn_forward.1}
  #allocation0 [shape = 'u32[]', space=smem, size = 0x4, offset = 0x4, fixed_abs, tag = 'smem constant byte address 0x4 - core index']
  #allocation1 [shape = 'u32[72,128]{1,0:T(1,128)}', space=vmem, size = 0x9000, scoped, tag = 'internal scratch']
  #allocation2 [shape = 'f32[24,128]{1,0:T(8,128)}', space=vmem, size = 0x3000, scoped, tag = 'scratch operand']
  #allocation3 [shape = 'f32[24,128]{1,0:T(8,128)}', space=vmem, size = 0x3000, scoped, tag = 'scratch operand']
  #allocation4 [shape = 'f32[1,1]{1,0:T(1,128)S(6)}', space=smem, size = 0x200, scoped, tag = 'scoped memory for cnn_forward.1']
  %s0 = inlined_call_operand.vmem [shape: f32[2,24,128], index: 0, kind: input, shape index: {}]
  %s1 = inlined_call_operand.hbm [shape: f32[4,7,128,128], index: 1, kind: input, shape index: {}]
  %s2 = inlined_call_operand.hbm [shape: f32[4,8,128], index: 2, kind: input, shape index: {}]
  %s3 = inlined_call_operand.hbm [shape: f32[8,128], index: 3, kind: input, shape index: {}]
  %s4 = inlined_call_operand.<no memory space> [shape: f32[1,1], index: 4, kind: input, shape index: {}]
  %s5 = inlined_call_operand.vmem [shape: f32[2,1,128], index: 5, kind: output, shape index: {}]
  %s6 = sld [smem:[#allocation0]]
  $region65: #{cnn_forward.1} parent=0
    _
  %s8 = ssub.s32 1, %s6
  %s9 = scalar_select 0, %s8, %s6
  %10 = sst [smem:[#allocation4]] %s4
  $region1: #{cnn_forward.1} parent=0
    #allocation5 [shape = 'u8[1835008]{0}', space=vmem, size = 0x1c0000, scoped, tag = 'input window, operand 1, single buffered']
    #allocation6 [shape = 's32[2]{0}', space=sflag, size = 0x8, scoped, tag = 'scoped memory for cnn_forward.1']
    #allocation7 [shape = 'u8[16384]{0}', space=vmem, size = 0x4000, scoped, tag = 'input window, operand 2, single buffered']
    #allocation8 [shape = 's32[1]{0}', space=sflag, size = 0x4, scoped, tag = 'scoped memory for cnn_forward.1']
    #allocation9 [shape = 'u8[4096]{0}', space=vmem, size = 0x1000, scoped, tag = 'input window, operand 3, single buffered']
    %11 = vsyncpa [#allocation6], 0
    %12 = vsyncpa [#allocation8], 0
    loop: start=0, step=1, limit=4
    $region2: #{cnn_forward.1} parent=1 // loop_pre_header
      _
    $region3: #{cnn_forward.1} parent=1 // loop_header
      %s14 = sphi 0, %s18
      %p15 = scmp.ge.s32.totalorder %s14, 4
      %s24 = sphi 0, %s26
      %s27 = sphi 0, %s24
      %s28 = sphi 0, %s27
      %s44 = sphi 0, %s28
      %s48 = sphi 0, %s48
      %s50 = sphi 0, %s48
      %s51 = sphi 0, %s50
      %s65 = sphi 0, %s51
      %s69 = sphi 0, %s69
      %s71 = sphi 0, %s69
      %s72 = sphi 0, %s71
      %s86 = sphi 0, %s72
      %s90 = sphi 0, %s90
      %s92 = sphi 0, %s90
      %s93 = sphi 0, %s92
      %s107 = sphi 0, %s93
      %s111 = sphi 0, %s111
      %s113 = sphi 0, %s111
      %s114 = sphi 0, %s113
      %s128 = sphi 0, %s114
      %s134 = sphi 0, %s136
      %s137 = sphi 0, %s134
      %s138 = sphi 0, %s137
      %s154 = sphi 0, %s138
    $region4: #{cnn_forward.1} parent=1 // loop_header_branch
      %17 = sbr.rel (%p15) target = $region8
    $region5: #{cnn_forward.1} parent=1 // loop_body
      %s19 = ssub.s32 %s14, 1
      %s20 = ssub.s32 %s14, 2
      %s21 = sadd.s32 %s14, 1
      %s22 = ssub.s32 %s14, %s21
      %p23 = scmp.eq.s32.totalorder %s22, 0
      %s25 = sadd.s32 %s24, 1
      %s26 = scalar_select %p23, %s24, %s25
      %p29 = pneg %p23
      %p30 = scmp.eq.s32.totalorder %s14, 1
      %p31 = por %p29, %p30
      %p32 = scmp.ne.s32.totalorder %s24, %s27
      %p33 = scmp.eq.s32.totalorder %s14, 0
      %p34 = por %p32, %p33
      %p35 = scmp.ne.s32.totalorder %s24, %s27
      %p36 = scmp.eq.s32.totalorder %s19, 1
      %p37 = por %p35, %p36
      %p38 = scmp.ne.s32.totalorder %s27, %s28
      %p39 = scmp.eq.s32.totalorder %s19, 0
      %p40 = por %p38, %p39
      %p41 = scmp.ne.s32.totalorder %s27, %s28
      %p42 = scmp.eq.s32.totalorder %s20, 1
      %p43 = por %p41, %p42
      %p45 = scmp.ne.s32.totalorder %s28, %s44
      %p46 = scmp.eq.s32.totalorder %s20, 0
      %p47 = por %p45, %p46
      %s49 = sadd.s32 %s48, 1
      %p52 = scmp.eq.s32.totalorder %s14, 1
      %p53 = scmp.ne.s32.totalorder %s48, %s50
      %p54 = scmp.eq.s32.totalorder %s14, 0
      %p55 = por %p53, %p54
      %p56 = scmp.ne.s32.totalorder %s48, %s50
      %p57 = scmp.eq.s32.totalorder %s19, 1
      %p58 = por %p56, %p57
      %p59 = scmp.ne.s32.totalorder %s50, %s51
      %p60 = scmp.eq.s32.totalorder %s19, 0
      %p61 = por %p59, %p60
      %p62 = scmp.ne.s32.totalorder %s50, %s51
      %p63 = scmp.eq.s32.totalorder %s20, 1
      %p64 = por %p62, %p63
      %p66 = scmp.ne.s32.totalorder %s51, %s65
      %p67 = scmp.eq.s32.totalorder %s20, 0
      %p68 = por %p66, %p67
      %s70 = sadd.s32 %s69, 1
      %p73 = scmp.eq.s32.totalorder %s14, 1
      %p74 = scmp.ne.s32.totalorder %s69, %s71
      %p75 = scmp.eq.s32.totalorder %s14, 0
      %p76 = por %p74, %p75
      %p77 = scmp.ne.s32.totalorder %s69, %s71
      %p78 = scmp.eq.s32.totalorder %s19, 1
      %p79 = por %p77, %p78
      %p80 = scmp.ne.s32.totalorder %s71, %s72
      %p81 = scmp.eq.s32.totalorder %s19, 0
      %p82 = por %p80, %p81
      %p83 = scmp.ne.s32.totalorder %s71, %s72
      %p84 = scmp.eq.s32.totalorder %s20, 1
      %p85 = por %p83, %p84
      %p87 = scmp.ne.s32.totalorder %s72, %s86
      %p88 = scmp.eq.s32.totalorder %s20, 0
      %p89 = por %p87, %p88
      %s91 = sadd.s32 %s90, 1
      %p94 = scmp.eq.s32.totalorder %s14, 1
      %p95 = scmp.ne.s32.totalorder %s90, %s92
      %p96 = scmp.eq.s32.totalorder %s14, 0
      %p97 = por %p95, %p96
      %p98 = scmp.ne.s32.totalorder %s90, %s92
      %p99 = scmp.eq.s32.totalorder %s19, 1
      %p100 = por %p98, %p99
      %p101 = scmp.ne.s32.totalorder %s92, %s93
      %p102 = scmp.eq.s32.totalorder %s19, 0
      %p103 = por %p101, %p102
      %p104 = scmp.ne.s32.totalorder %s92, %s93
      %p105 = scmp.eq.s32.totalorder %s20, 1
      %p106 = por %p104, %p105
      %p108 = scmp.ne.s32.totalorder %s93, %s107
      %p109 = scmp.eq.s32.totalorder %s20, 0
      %p110 = por %p108, %p109
      %s112 = sadd.s32 %s111, 1
      %p115 = scmp.eq.s32.totalorder %s14, 1
      %p116 = scmp.ne.s32.totalorder %s111, %s113
      %p117 = scmp.eq.s32.totalorder %s14, 0
      %p118 = por %p116, %p117
      %p119 = scmp.ne.s32.totalorder %s111, %s113
      %p120 = scmp.eq.s32.totalorder %s19, 1
      %p121 = por %p119, %p120
      %p122 = scmp.ne.s32.totalorder %s113, %s114
      %p123 = scmp.eq.s32.totalorder %s19, 0
      %p124 = por %p122, %p123
      %p125 = scmp.ne.s32.totalorder %s113, %s114
      %p126 = scmp.eq.s32.totalorder %s20, 1
      %p127 = por %p125, %p126
      %p129 = scmp.ne.s32.totalorder %s114, %s128
      %p130 = scmp.eq.s32.totalorder %s20, 0
      %p131 = por %p129, %p130
      %s132 = ssub.s32 %s14, %s21
      %p133 = scmp.eq.s32.totalorder %s132, 0
      %s135 = sadd.s32 %s134, 1
      %s136 = scalar_select %p133, %s134, %s135
      %p139 = pneg %p133
      %p140 = scmp.eq.s32.totalorder %s14, 1
      %p141 = por %p139, %p140
      %p142 = scmp.ne.s32.totalorder %s134, %s137
      %p143 = scmp.eq.s32.totalorder %s14, 0
      %p144 = por %p142, %p143
      %p145 = scmp.ne.s32.totalorder %s134, %s137
      %p146 = scmp.eq.s32.totalorder %s19, 1
      %p147 = por %p145, %p146
      %p148 = scmp.ne.s32.totalorder %s137, %s138
      %p149 = scmp.eq.s32.totalorder %s19, 0
      %p150 = por %p148, %p149
      %p151 = scmp.ne.s32.totalorder %s137, %s138
      %p152 = scmp.eq.s32.totalorder %s20, 1
      %p153 = por %p151, %p152
      %p155 = scmp.ne.s32.totalorder %s138, %s154
      %p156 = scmp.eq.s32.totalorder %s20, 0
      %p157 = por %p155, %p156
      %p158 = scmp.le.s32.totalorder 1, %s14
      %p159 = scmp.lt.s32.totalorder %s14, 3
      %p160 = pnand %p158, %p159
      %p161 = pneg %p160
      // Predicated region
      $region9: #{cnn_forward.1} parent=5 // pred_check
        _
      $region10: #{cnn_forward.1} parent=5 // pred_check_branch
        %163 = sbr.rel (%p160) target = $region12
      $region11: #{cnn_forward.1} parent=5 // pred_region
        %s164 = ssub.s32 %s14, 1
        // Predicated region
        $region13: #{cnn_forward.1} parent=11 // pred_check
          %p165 = pneg %p61
        $region14: #{cnn_forward.1} parent=11 // pred_check_branch
          %167 = sbr.rel (%p165) target = $region16
        $region15: #{cnn_forward.1} parent=11 // pred_region
          %169 = vsyncadd [#allocation6], 0
          %s170 = sshll.u32 %s1, 4
          %s171 = int_to_ptr.hbm [resolvable:$true] %s170
          %s172 = sshll.u32 [#allocation5], 4
          %s173 = int_to_ptr.vmem [resolvable:$true] %s172
          %178 = dma.hbm_to_vmem [thread:$0]  %s171, 57344, %s173, [#allocation6], 128, 128, 8
        $region16: #{cnn_forward.1} parent=11 // pred_fallthru
          _
        // Predicated region
        $region17: #{cnn_forward.1} parent=11 // pred_check
          %p179 = pneg %p82
        $region18: #{cnn_forward.1} parent=11 // pred_check_branch
          %181 = sbr.rel (%p179) target = $region20
        $region19: #{cnn_forward.1} parent=11 // pred_region
          %183 = vsyncadd [#allocation8], 0
          %s184 = sshll.u32 %s2, 4
          %s185 = int_to_ptr.hbm [resolvable:$true] %s184
          %s186 = sshll.u32 [#allocation7], 4
          %s187 = int_to_ptr.vmem [resolvable:$true] %s186
          %192 = dma.hbm_to_vmem [thread:$0]  %s185, 512, %s187, [#allocation8], 128, 128, 8
        $region20: #{cnn_forward.1} parent=11 // pred_fallthru
          _
        // Predicated region
        $region21: #{cnn_forward.1} parent=11 // pred_check
          %p193 = pneg %p103
        $region22: #{cnn_forward.1} parent=11 // pred_check_branch
          %195 = sbr.rel (%p193) target = $region24
        $region23: #{cnn_forward.1} parent=11 // pred_region
          %197 = vsyncadd [#allocation8], 0
          %s199 = sshll.u32 %s3, 4
          %s200 = int_to_ptr.hbm [resolvable:$true] %s199
          %s201 = sshll.u32 [#allocation9], 4
          %s202 = int_to_ptr.vmem [resolvable:$true] %s201
          %204 = dma.hbm_to_vmem [thread:$0]  %s200, 128, %s202, [#allocation8]
        $region24: #{cnn_forward.1} parent=11 // pred_fallthru
          _
        // Predicated region
        $region25: #{cnn_forward.1} parent=11 // pred_check
          %p205 = pneg %p124
        $region26: #{cnn_forward.1} parent=11 // pred_check_branch
          %207 = sbr.rel (%p205) target = $region28
        $region27: #{cnn_forward.1} parent=11 // pred_region
          _
        $region28: #{cnn_forward.1} parent=11 // pred_fallthru
          _
      $region12: #{cnn_forward.1} parent=5 // pred_fallthru
        _
      %p208 = scmp.lt.s32.totalorder %s14, 2
      // Predicated region
      $region29: #{cnn_forward.1} parent=5 // pred_check
        %p209 = pneg %p208
      $region30: #{cnn_forward.1} parent=5 // pred_check_branch
        %211 = sbr.rel (%p209) target = $region32
      $region31: #{cnn_forward.1} parent=5 // pred_region
        // Predicated region
        $region33: #{cnn_forward.1} parent=31 // pred_check
          %p212 = pneg %p34
        $region34: #{cnn_forward.1} parent=31 // pred_check_branch
          %214 = sbr.rel (%p212) target = $region36
        $region35: #{cnn_forward.1} parent=31 // pred_region
          %p215 = scmp.lt.s32.totalorder %s14, 1
          %s216 = scalar_select %p215, %s14, 1
          %s217 = smul.addr %s216, 3
          %s218 = smul.addr %s217, 8
          %s219 = scalar_lea.vmem %s0, %s218
        $region36: #{cnn_forward.1} parent=31 // pred_fallthru
          _
      $region32: #{cnn_forward.1} parent=5 // pred_fallthru
        _
      %p220 = scmp.le.s32.totalorder 1, %s14
      %p221 = scmp.lt.s32.totalorder %s14, 3
      %p222 = pnand %p220, %p221
      %p223 = pneg %p222
      // Predicated region
      $region37: #{cnn_forward.1} parent=5 // pred_check
        _
      $region38: #{cnn_forward.1} parent=5 // pred_check_branch
        %225 = sbr.rel (%p222) target = $region40
      $region39: #{cnn_forward.1} parent=5 // pred_region
        %s226 = ssub.s32 %s14, 1
        // Predicated region
        $region41: #{cnn_forward.1} parent=39 // pred_check
          %p227 = pneg %p61
        $region42: #{cnn_forward.1} parent=39 // pred_check_branch
          %229 = sbr.rel (%p227) target = $region44
        $region43: #{cnn_forward.1} parent=39 // pred_region
          %231 = dma.done [#allocation6], 57344
        $region44: #{cnn_forward.1} parent=39 // pred_fallthru
          _
        // Predicated region
        $region45: #{cnn_forward.1} parent=39 // pred_check
          %p232 = pneg %p82
        $region46: #{cnn_forward.1} parent=39 // pred_check_branch
          %234 = sbr.rel (%p232) target = $region48
        $region47: #{cnn_forward.1} parent=39 // pred_region
          %236 = dma.done [#allocation8], 512
        $region48: #{cnn_forward.1} parent=39 // pred_fallthru
          _
        // Predicated region
        $region49: #{cnn_forward.1} parent=39 // pred_check
          %p237 = pneg %p103
        $region50: #{cnn_forward.1} parent=39 // pred_check_branch
          %239 = sbr.rel (%p237) target = $region52
        $region51: #{cnn_forward.1} parent=39 // pred_region
          %241 = dma.done [#allocation8], 128
        $region52: #{cnn_forward.1} parent=39 // pred_fallthru
          _
        %p242 = scmp.lt.s32.totalorder %s19, 1
        %s243 = scalar_select %p242, %s19, 1
        %s244 = smul.addr %s243, 3
        %s245 = smul.addr %s244, 8
        %s246 = scalar_lea.vmem %s0, %s245
        %p247 = pneg %p40
        %p248 = pneg %p37
        %p249 = pneg %p61
        %p250 = pneg %p58
        %p251 = pneg %p82
        %p252 = pneg %p79
        %p253 = pneg %p103
        %p254 = pneg %p100
        %p255 = pneg %p124
        %p256 = pneg %p121
        %p257 = pneg %p150
        %p258 = pneg %p147
        %p259 = scmp.lt.s32.totalorder %s19, 1
        %s260 = scalar_select %p259, %s19, 1
        %s261 = scalar_lea.vmem %s5, %s260
        %p262 = scmp.lt.s32.totalorder %s19, 1
        %s263 = scalar_select %p262, %s19, 1
        %s264 = smul.addr %s263, 3
        %s265 = smul.addr %s264, 8
        %s266 = scalar_lea.vmem %s0, %s265
        %p267 = scmp.lt.s32.totalorder %s19, 1
        %s268 = scalar_select %p267, %s19, 1
        %s269 = scalar_lea.vmem %s5, %s268
        %v270 = vld [vmem:[%s266] sm:$0xff]
        %v271 = vld [vmem:[%s266 + $0x8] sm:$0xff]
        %v272 = vld [vmem:[%s266 + $0x10] sm:$0xff]
        %273 = vst [vmem:[#allocation2] sm:$0xff] %v270
        %274 = vst [vmem:[#allocation2 + $0x8] sm:$0xff] %v271
        %275 = vst [vmem:[#allocation2 + $0x10] sm:$0xff] %v272
        %276 = vst [vmem:[#allocation3] sm:$0xff] 0.0
        %277 = vst [vmem:[#allocation3 + $0x8] sm:$0xff] 0.0
        %278 = vst [vmem:[#allocation3 + $0x10] sm:$0xff] 0.0
        %v279 = vld [vmem:[#allocation2] sm:$0xff]
        %v280 = vld [vmem:[#allocation2 + $0x8] sm:$0xff]
        %v281 = vld [vmem:[#allocation2 + $0x10] sm:$0x3]
        %v282 = vld [vmem:[#allocation2 + $0x1] sm:$0xff]
        %v283 = vld [vmem:[#allocation2 + $0x9] sm:$0xff]
        %v284 = vld [vmem:[#allocation2 + $0x11] sm:$0x3]
        %v285 = vld [vmem:[#allocation2 + $0x2] sm:$0xff]
        %v286 = vld [vmem:[#allocation2 + $0xa] sm:$0xff]
        %v287 = vld [vmem:[#allocation2 + $0x12] sm:$0x3]
        %v288 = vld [vmem:[#allocation5] sm:$0xff]
        %v289 = vld [vmem:[#allocation5 + $0x8] sm:$0xff]
        %v290 = vld [vmem:[#allocation5 + $0x10] sm:$0xff]
        %v291 = vld [vmem:[#allocation5 + $0x18] sm:$0xff]
        %v292 = vld [vmem:[#allocation5 + $0x20] sm:$0xff]
        %v293 = vld [vmem:[#allocation5 + $0x28] sm:$0xff]
        %v294 = vld [vmem:[#allocation5 + $0x30] sm:$0xff]
        %v295 = vld [vmem:[#allocation5 + $0x38] sm:$0xff]
        %v296 = vld [vmem:[#allocation5 + $0x40] sm:$0xff]
        %v297 = vld [vmem:[#allocation5 + $0x48] sm:$0xff]
        %v298 = vld [vmem:[#allocation5 + $0x50] sm:$0xff]
        %v299 = vld [vmem:[#allocation5 + $0x58] sm:$0xff]
        %v300 = vld [vmem:[#allocation5 + $0x60] sm:$0xff]
        %v301 = vld [vmem:[#allocation5 + $0x68] sm:$0xff]
        %v302 = vld [vmem:[#allocation5 + $0x70] sm:$0xff]
        %v303 = vld [vmem:[#allocation5 + $0x78] sm:$0xff]
        %s304 = scalar_lea.vmem [#allocation5], 128
        %v305 = vld [vmem:[%s304] sm:$0xff]
        %v306 = vld [vmem:[%s304 + $0x8] sm:$0xff]
        %v307 = vld [vmem:[%s304 + $0x10] sm:$0xff]
        %v308 = vld [vmem:[%s304 + $0x18] sm:$0xff]
        %v309 = vld [vmem:[%s304 + $0x20] sm:$0xff]
        %v310 = vld [vmem:[%s304 + $0x28] sm:$0xff]
        %v311 = vld [vmem:[%s304 + $0x30] sm:$0xff]
        %v312 = vld [vmem:[%s304 + $0x38] sm:$0xff]
        %v313 = vld [vmem:[%s304 + $0x40] sm:$0xff]
        %v314 = vld [vmem:[%s304 + $0x48] sm:$0xff]
        %v315 = vld [vmem:[%s304 + $0x50] sm:$0xff]
        %v316 = vld [vmem:[%s304 + $0x58] sm:$0xff]
        %v317 = vld [vmem:[%s304 + $0x60] sm:$0xff]
        %v318 = vld [vmem:[%s304 + $0x68] sm:$0xff]
        %v319 = vld [vmem:[%s304 + $0x70] sm:$0xff]
        %v320 = vld [vmem:[%s304 + $0x78] sm:$0xff]
        %321 = vmatpush.msra.mxu0 %v320
        %322 = vmatpush.msra.mxu0 %v319
        %323 = vmatpush.msra.mxu0 %v318
        %324 = vmatpush.msra.mxu0 %v317
        %325 = vmatpush.msra.mxu0 %v316
        %326 = vmatpush.msra.mxu0 %v315
        %327 = vmatpush.msra.mxu0 %v314
        %328 = vmatpush.msra.mxu0 %v313
        %329 = vmatpush.msra.mxu0 %v312
        %330 = vmatpush.msra.mxu0 %v311
        %331 = vmatpush.msra.mxu0 %v310
        %332 = vmatpush.msra.mxu0 %v309
        %333 = vmatpush.msra.mxu0 %v308
        %334 = vmatpush.msra.mxu0 %v307
        %335 = vmatpush.msra.mxu0 %v306
        %336 = vmatpush.msra.mxu0 %v305
        %337 = vmatmul.f32.gmra.mxu0 %v282
        %v338 = vpop.f32.mrf.mxu0
        %v339 = vadd.f32 0.0, %v338
        %340 = vmatmul.f32.gmra.mxu0 %v283
        %v341 = vpop.f32.mrf.mxu0
        %v342 = vadd.f32 0.0, %v341
        %343 = vmatmul.f32.gmra.mxu0 %v284
        %v344 = vpop.f32.mrf.mxu0
        %v345 = vadd.f32 0.0, %v344
        %346 = vdwg.mxu0
        %347 = vmatpush.msra.mxu0 %v303
        %348 = vmatpush.msra.mxu0 %v302
        %349 = vmatpush.msra.mxu0 %v301
        %350 = vmatpush.msra.mxu0 %v300
        %351 = vmatpush.msra.mxu0 %v299
        %352 = vmatpush.msra.mxu0 %v298
        %353 = vmatpush.msra.mxu0 %v297
        %354 = vmatpush.msra.mxu0 %v296
        %355 = vmatpush.msra.mxu0 %v295
        %356 = vmatpush.msra.mxu0 %v294
        %357 = vmatpush.msra.mxu0 %v293
        %358 = vmatpush.msra.mxu0 %v292
        %359 = vmatpush.msra.mxu0 %v291
        %360 = vmatpush.msra.mxu0 %v290
        %361 = vmatpush.msra.mxu0 %v289
        %362 = vmatpush.msra.mxu0 %v288
        %363 = vmatmul.f32.gmra.mxu0 %v279
        %v364 = vpop.f32.mrf.mxu0
        %v365 = vadd.f32 %v339, %v364
        %366 = vmatmul.f32.gmra.mxu0 %v280
        %v367 = vpop.f32.mrf.mxu0
        %v368 = vadd.f32 %v342, %v367
        %369 = vmatmul.f32.gmra.mxu0 %v281
        %v370 = vpop.f32.mrf.mxu0
        %v371 = vadd.f32 %v345, %v370
        %372 = vdwg.mxu0
        %s373 = scalar_lea.vmem [#allocation5], 256
        %v374 = vld [vmem:[%s373] sm:$0xff]
        %v375 = vld [vmem:[%s373 + $0x8] sm:$0xff]
        %v376 = vld [vmem:[%s373 + $0x10] sm:$0xff]
        %v377 = vld [vmem:[%s373 + $0x18] sm:$0xff]
        %v378 = vld [vmem:[%s373 + $0x20] sm:$0xff]
        %v379 = vld [vmem:[%s373 + $0x28] sm:$0xff]
        %v380 = vld [vmem:[%s373 + $0x30] sm:$0xff]
        %v381 = vld [vmem:[%s373 + $0x38] sm:$0xff]
        %v382 = vld [vmem:[%s373 + $0x40] sm:$0xff]
        %v383 = vld [vmem:[%s373 + $0x48] sm:$0xff]
        %v384 = vld [vmem:[%s373 + $0x50] sm:$0xff]
        %v385 = vld [vmem:[%s373 + $0x58] sm:$0xff]
        %v386 = vld [vmem:[%s373 + $0x60] sm:$0xff]
        %v387 = vld [vmem:[%s373 + $0x68] sm:$0xff]
        %v388 = vld [vmem:[%s373 + $0x70] sm:$0xff]
        %v389 = vld [vmem:[%s373 + $0x78] sm:$0xff]
        %390 = vmatpush.msra.mxu0 %v389
        %391 = vmatpush.msra.mxu0 %v388
        %392 = vmatpush.msra.mxu0 %v387
        %393 = vmatpush.msra.mxu0 %v386
        %394 = vmatpush.msra.mxu0 %v385
        %395 = vmatpush.msra.mxu0 %v384
        %396 = vmatpush.msra.mxu0 %v383
        %397 = vmatpush.msra.mxu0 %v382
        %398 = vmatpush.msra.mxu0 %v381
        %399 = vmatpush.msra.mxu0 %v380
        %400 = vmatpush.msra.mxu0 %v379
        %401 = vmatpush.msra.mxu0 %v378
        %402 = vmatpush.msra.mxu0 %v377
        %403 = vmatpush.msra.mxu0 %v376
        %404 = vmatpush.msra.mxu0 %v375
        %405 = vmatpush.msra.mxu0 %v374
        %406 = vmatmul.f32.gmra.mxu0 %v285
        %v407 = vpop.f32.mrf.mxu0
        %v408 = vadd.f32 0.0, %v407
        %409 = vmatmul.f32.gmra.mxu0 %v286
        %v410 = vpop.f32.mrf.mxu0
        %v411 = vadd.f32 0.0, %v410
        %412 = vmatmul.f32.gmra.mxu0 %v287
        %v413 = vpop.f32.mrf.mxu0
        %v414 = vadd.f32 0.0, %v413
        %415 = vdwg.mxu0
        %v416 = vadd.f32 %v365, %v408
        %v417 = vadd.f32 %v368, %v411
        %v418 = vadd.f32 %v371, %v414
        %v419 = vld [vmem:[#allocation7] sm:$0x1]
        %v420 = vperm.slane %v419, 0
        %v421 = vadd.f32 %v416, %v420
        %v422 = vadd.f32 %v417, %v420
        %v423 = vadd.f32 %v418, %v420
        %v424 = vmax.f32 %v421, 0.0
        %v425 = vmax.f32 %v422, 0.0
        %v426 = vmax.f32 %v423, 0.0
        %427 = vst [vmem:[#allocation3 + $0x1] sm:$0xff] %v424
        %428 = vst [vmem:[#allocation3 + $0x9] sm:$0xff] %v425
        %429 = vst [vmem:[#allocation3 + $0x11] sm:$0x3] %v426
        %v430 = vld [vmem:[#allocation3] sm:$0xff]
        %v431 = vld [vmem:[#allocation3 + $0x8] sm:$0xff]
        %v432 = vld [vmem:[#allocation3 + $0x10] sm:$0x3]
        %v433 = vld [vmem:[#allocation3 + $0x1] sm:$0xff]
        %v434 = vld [vmem:[#allocation3 + $0x9] sm:$0xff]
        %v435 = vld [vmem:[#allocation3 + $0x11] sm:$0x3]
        %v436 = vld [vmem:[#allocation3 + $0x2] sm:$0xff]
        %v437 = vld [vmem:[#allocation3 + $0xa] sm:$0xff]
        %v438 = vld [vmem:[#allocation3 + $0x12] sm:$0x3]
        %s439 = scalar_lea.vmem [#allocation5], 384
        %v440 = vld [vmem:[%s439] sm:$0xff]
        %v441 = vld [vmem:[%s439 + $0x8] sm:$0xff]
        %v442 = vld [vmem:[%s439 + $0x10] sm:$0xff]
        %v443 = vld [vmem:[%s439 + $0x18] sm:$0xff]
        %v444 = vld [vmem:[%s439 + $0x20] sm:$0xff]
        %v445 = vld [vmem:[%s439 + $0x28] sm:$0xff]
        %v446 = vld [vmem:[%s439 + $0x30] sm:$0xff]
        %v447 = vld [vmem:[%s439 + $0x38] sm:$0xff]
        %v448 = vld [vmem:[%s439 + $0x40] sm:$0xff]
        %v449 = vld [vmem:[%s439 + $0x48] sm:$0xff]
        %v450 = vld [vmem:[%s439 + $0x50] sm:$0xff]
        %v451 = vld [vmem:[%s439 + $0x58] sm:$0xff]
        %v452 = vld [vmem:[%s439 + $0x60] sm:$0xff]
        %v453 = vld [vmem:[%s439 + $0x68] sm:$0xff]
        %v454 = vld [vmem:[%s439 + $0x70] sm:$0xff]
        %v455 = vld [vmem:[%s439 + $0x78] sm:$0xff]
        %s456 = scalar_lea.vmem [#allocation5], 512
        %v457 = vld [vmem:[%s456] sm:$0xff]
        %v458 = vld [vmem:[%s456 + $0x8] sm:$0xff]
        %v459 = vld [vmem:[%s456 + $0x10] sm:$0xff]
        %v460 = vld [vmem:[%s456 + $0x18] sm:$0xff]
        %v461 = vld [vmem:[%s456 + $0x20] sm:$0xff]
        %v462 = vld [vmem:[%s456 + $0x28] sm:$0xff]
        %v463 = vld [vmem:[%s456 + $0x30] sm:$0xff]
        %v464 = vld [vmem:[%s456 + $0x38] sm:$0xff]
        %v465 = vld [vmem:[%s456 + $0x40] sm:$0xff]
        %v466 = vld [vmem:[%s456 + $0x48] sm:$0xff]
        %v467 = vld [vmem:[%s456 + $0x50] sm:$0xff]
        %v468 = vld [vmem:[%s456 + $0x58] sm:$0xff]
        %v469 = vld [vmem:[%s456 + $0x60] sm:$0xff]
        %v470 = vld [vmem:[%s456 + $0x68] sm:$0xff]
        %v471 = vld [vmem:[%s456 + $0x70] sm:$0xff]
        %v472 = vld [vmem:[%s456 + $0x78] sm:$0xff]
        %473 = vmatpush.msra.mxu0 %v472
        %474 = vmatpush.msra.mxu0 %v471
        %475 = vmatpush.msra.mxu0 %v470
        %476 = vmatpush.msra.mxu0 %v469
        %477 = vmatpush.msra.mxu0 %v468
        %478 = vmatpush.msra.mxu0 %v467
        %479 = vmatpush.msra.mxu0 %v466
        %480 = vmatpush.msra.mxu0 %v465
        %481 = vmatpush.msra.mxu0 %v464
        %482 = vmatpush.msra.mxu0 %v463
        %483 = vmatpush.msra.mxu0 %v462
        %484 = vmatpush.msra.mxu0 %v461
        %485 = vmatpush.msra.mxu0 %v460
        %486 = vmatpush.msra.mxu0 %v459
        %487 = vmatpush.msra.mxu0 %v458
        %488 = vmatpush.msra.mxu0 %v457
        %489 = vmatmul.f32.gmra.mxu0 %v433
        %v490 = vpop.f32.mrf.mxu0
        %v491 = vadd.f32 0.0, %v490
        %492 = vmatmul.f32.gmra.mxu0 %v434
        %v493 = vpop.f32.mrf.mxu0
        %v494 = vadd.f32 0.0, %v493
        %495 = vmatmul.f32.gmra.mxu0 %v435
        %v496 = vpop.f32.mrf.mxu0
        %v497 = vadd.f32 0.0, %v496
        %498 = vdwg.mxu0
        %499 = vmatpush.msra.mxu0 %v455
        %500 = vmatpush.msra.mxu0 %v454
        %501 = vmatpush.msra.mxu0 %v453
        %502 = vmatpush.msra.mxu0 %v452
        %503 = vmatpush.msra.mxu0 %v451
        %504 = vmatpush.msra.mxu0 %v450
        %505 = vmatpush.msra.mxu0 %v449
        %506 = vmatpush.msra.mxu0 %v448
        %507 = vmatpush.msra.mxu0 %v447
        %508 = vmatpush.msra.mxu0 %v446
        %509 = vmatpush.msra.mxu0 %v445
        %510 = vmatpush.msra.mxu0 %v444
        %511 = vmatpush.msra.mxu0 %v443
        %512 = vmatpush.msra.mxu0 %v442
        %513 = vmatpush.msra.mxu0 %v441
        %514 = vmatpush.msra.mxu0 %v440
        %515 = vmatmul.f32.gmra.mxu0 %v430
        %v516 = vpop.f32.mrf.mxu0
        %v517 = vadd.f32 %v491, %v516
        %518 = vmatmul.f32.gmra.mxu0 %v431
        %v519 = vpop.f32.mrf.mxu0
        %v520 = vadd.f32 %v494, %v519
        %521 = vmatmul.f32.gmra.mxu0 %v432
        %v522 = vpop.f32.mrf.mxu0
        %v523 = vadd.f32 %v497, %v522
        %524 = vdwg.mxu0
        %s525 = scalar_lea.vmem [#allocation5], 640
        %v526 = vld [vmem:[%s525] sm:$0xff]
        %v527 = vld [vmem:[%s525 + $0x8] sm:$0xff]
        %v528 = vld [vmem:[%s525 + $0x10] sm:$0xff]
        %v529 = vld [vmem:[%s525 + $0x18] sm:$0xff]
        %v530 = vld [vmem:[%s525 + $0x20] sm:$0xff]
        %v531 = vld [vmem:[%s525 + $0x28] sm:$0xff]
        %v532 = vld [vmem:[%s525 + $0x30] sm:$0xff]
        %v533 = vld [vmem:[%s525 + $0x38] sm:$0xff]
        %v534 = vld [vmem:[%s525 + $0x40] sm:$0xff]
        %v535 = vld [vmem:[%s525 + $0x48] sm:$0xff]
        %v536 = vld [vmem:[%s525 + $0x50] sm:$0xff]
        %v537 = vld [vmem:[%s525 + $0x58] sm:$0xff]
        %v538 = vld [vmem:[%s525 + $0x60] sm:$0xff]
        %v539 = vld [vmem:[%s525 + $0x68] sm:$0xff]
        %v540 = vld [vmem:[%s525 + $0x70] sm:$0xff]
        %v541 = vld [vmem:[%s525 + $0x78] sm:$0xff]
        %542 = vmatpush.msra.mxu0 %v541
        %543 = vmatpush.msra.mxu0 %v540
        %544 = vmatpush.msra.mxu0 %v539
        %545 = vmatpush.msra.mxu0 %v538
        %546 = vmatpush.msra.mxu0 %v537
        %547 = vmatpush.msra.mxu0 %v536
        %548 = vmatpush.msra.mxu0 %v535
        %549 = vmatpush.msra.mxu0 %v534
        %550 = vmatpush.msra.mxu0 %v533
        %551 = vmatpush.msra.mxu0 %v532
        %552 = vmatpush.msra.mxu0 %v531
        %553 = vmatpush.msra.mxu0 %v530
        %554 = vmatpush.msra.mxu0 %v529
        %555 = vmatpush.msra.mxu0 %v528
        %556 = vmatpush.msra.mxu0 %v527
        %557 = vmatpush.msra.mxu0 %v526
        %558 = vmatmul.f32.gmra.mxu0 %v436
        %v559 = vpop.f32.mrf.mxu0
        %v560 = vadd.f32 0.0, %v559
        %561 = vmatmul.f32.gmra.mxu0 %v437
        %v562 = vpop.f32.mrf.mxu0
        %v563 = vadd.f32 0.0, %v562
        %564 = vmatmul.f32.gmra.mxu0 %v438
        %v565 = vpop.f32.mrf.mxu0
        %v566 = vadd.f32 0.0, %v565
        %567 = vdwg.mxu0
        %v568 = vadd.f32 %v517, %v560
        %v569 = vadd.f32 %v520, %v563
        %v570 = vadd.f32 %v523, %v566
        %v571 = vld [vmem:[#allocation7 + $0x1] sm:$0x1]
        %v572 = vperm.slane %v571, 0
        %v573 = vadd.f32 %v568, %v572
        %v574 = vadd.f32 %v569, %v572
        %v575 = vadd.f32 %v570, %v572
        %v576 = vld [vmem:[#allocation2 + $0x1] sm:$0xff]
        %v577 = vld [vmem:[#allocation2 + $0x9] sm:$0xff]
        %v578 = vld [vmem:[#allocation2 + $0x11] sm:$0x3]
        %s579 = scalar_lea.vmem [#allocation5], 768
        %v580 = vld [vmem:[%s579] sm:$0xff]
        %v581 = vld [vmem:[%s579 + $0x8] sm:$0xff]
        %v582 = vld [vmem:[%s579 + $0x10] sm:$0xff]
        %v583 = vld [vmem:[%s579 + $0x18] sm:$0xff]
        %v584 = vld [vmem:[%s579 + $0x20] sm:$0xff]
        %v585 = vld [vmem:[%s579 + $0x28] sm:$0xff]
        %v586 = vld [vmem:[%s579 + $0x30] sm:$0xff]
        %v587 = vld [vmem:[%s579 + $0x38] sm:$0xff]
        %v588 = vld [vmem:[%s579 + $0x40] sm:$0xff]
        %v589 = vld [vmem:[%s579 + $0x48] sm:$0xff]
        %v590 = vld [vmem:[%s579 + $0x50] sm:$0xff]
        %v591 = vld [vmem:[%s579 + $0x58] sm:$0xff]
        %v592 = vld [vmem:[%s579 + $0x60] sm:$0xff]
        %v593 = vld [vmem:[%s579 + $0x68] sm:$0xff]
        %v594 = vld [vmem:[%s579 + $0x70] sm:$0xff]
        %v595 = vld [vmem:[%s579 + $0x78] sm:$0xff]
        %v596 = vld [vmem:[#allocation7 + $0x2] sm:$0x1]
        %v597 = vperm.slane %v596, 0
        %598 = vmatpush.msra.mxu0 %v595
        %599 = vmatpush.msra.mxu0 %v594
        %600 = vmatpush.msra.mxu0 %v593
        %601 = vmatpush.msra.mxu0 %v592
        %602 = vmatpush.msra.mxu0 %v591
        %603 = vmatpush.msra.mxu0 %v590
        %604 = vmatpush.msra.mxu0 %v589
        %605 = vmatpush.msra.mxu0 %v588
        %606 = vmatpush.msra.mxu0 %v587
        %607 = vmatpush.msra.mxu0 %v586
        %608 = vmatpush.msra.mxu0 %v585
        %609 = vmatpush.msra.mxu0 %v584
        %610 = vmatpush.msra.mxu0 %v583
        %611 = vmatpush.msra.mxu0 %v582
        %612 = vmatpush.msra.mxu0 %v581
        %613 = vmatpush.msra.mxu0 %v580
        %614 = vmatmul.f32.gmra.mxu0 %v576
        %v615 = vpop.f32.mrf.mxu0
        %v616 = vadd.f32 %v597, %v615
        %617 = vmatmul.f32.gmra.mxu0 %v577
        %v618 = vpop.f32.mrf.mxu0
        %v619 = vadd.f32 %v597, %v618
        %620 = vmatmul.f32.gmra.mxu0 %v578
        %v621 = vpop.f32.mrf.mxu0
        %v622 = vadd.f32 %v597, %v621
        %623 = vdwg.mxu0
        %v624 = vadd.f32 %v573, %v616
        %v625 = vadd.f32 %v574, %v619
        %v626 = vadd.f32 %v575, %v622
        %v627 = vmax.f32 %v624, 0.0
        %v628 = vmax.f32 %v625, 0.0
        %v629 = vmax.f32 %v626, 0.0
        %630 = vst [vmem:[#allocation2 + $0x1] sm:$0xff] %v627
        %631 = vst [vmem:[#allocation2 + $0x9] sm:$0xff] %v628
        %632 = vst [vmem:[#allocation2 + $0x11] sm:$0x3] %v629
        %v633 = vld [vmem:[#allocation2] sm:$0xff]
        %v634 = vld [vmem:[#allocation2 + $0x8] sm:$0xff]
        %v635 = vld [vmem:[#allocation2 + $0x10] sm:$0x3]
        %v636 = vld [vmem:[#allocation2 + $0x1] sm:$0xff]
        %v637 = vld [vmem:[#allocation2 + $0x9] sm:$0xff]
        %v638 = vld [vmem:[#allocation2 + $0x11] sm:$0x3]
        %v639 = vld [vmem:[#allocation2 + $0x2] sm:$0xff]
        %v640 = vld [vmem:[#allocation2 + $0xa] sm:$0xff]
        %v641 = vld [vmem:[#allocation2 + $0x12] sm:$0x3]
        %s642 = scalar_lea.vmem [#allocation5], 896
        %v643 = vld [vmem:[%s642] sm:$0xff]
        %v644 = vld [vmem:[%s642 + $0x8] sm:$0xff]
        %v645 = vld [vmem:[%s642 + $0x10] sm:$0xff]
        %v646 = vld [vmem:[%s642 + $0x18] sm:$0xff]
        %v647 = vld [vmem:[%s642 + $0x20] sm:$0xff]
        %v648 = vld [vmem:[%s642 + $0x28] sm:$0xff]
        %v649 = vld [vmem:[%s642 + $0x30] sm:$0xff]
        %v650 = vld [vmem:[%s642 + $0x38] sm:$0xff]
        %v651 = vld [vmem:[%s642 + $0x40] sm:$0xff]
        %v652 = vld [vmem:[%s642 + $0x48] sm:$0xff]
        %v653 = vld [vmem:[%s642 + $0x50] sm:$0xff]
        %v654 = vld [vmem:[%s642 + $0x58] sm:$0xff]
        %v655 = vld [vmem:[%s642 + $0x60] sm:$0xff]
        %v656 = vld [vmem:[%s642 + $0x68] sm:$0xff]
        %v657 = vld [vmem:[%s642 + $0x70] sm:$0xff]
        %v658 = vld [vmem:[%s642 + $0x78] sm:$0xff]
        %s659 = scalar_lea.vmem [#allocation5], 1024
        %v660 = vld [vmem:[%s659] sm:$0xff]
        %v661 = vld [vmem:[%s659 + $0x8] sm:$0xff]
        %v662 = vld [vmem:[%s659 + $0x10] sm:$0xff]
        %v663 = vld [vmem:[%s659 + $0x18] sm:$0xff]
        %v664 = vld [vmem:[%s659 + $0x20] sm:$0xff]
        %v665 = vld [vmem:[%s659 + $0x28] sm:$0xff]
        %v666 = vld [vmem:[%s659 + $0x30] sm:$0xff]
        %v667 = vld [vmem:[%s659 + $0x38] sm:$0xff]
        %v668 = vld [vmem:[%s659 + $0x40] sm:$0xff]
        %v669 = vld [vmem:[%s659 + $0x48] sm:$0xff]
        %v670 = vld [vmem:[%s659 + $0x50] sm:$0xff]
        %v671 = vld [vmem:[%s659 + $0x58] sm:$0xff]
        %v672 = vld [vmem:[%s659 + $0x60] sm:$0xff]
        %v673 = vld [vmem:[%s659 + $0x68] sm:$0xff]
        %v674 = vld [vmem:[%s659 + $0x70] sm:$0xff]
        %v675 = vld [vmem:[%s659 + $0x78] sm:$0xff]
        %676 = vmatpush.msra.mxu0 %v675
        %677 = vmatpush.msra.mxu0 %v674
        %678 = vmatpush.msra.mxu0 %v673
        %679 = vmatpush.msra.mxu0 %v672
        %680 = vmatpush.msra.mxu0 %v671
        %681 = vmatpush.msra.mxu0 %v670
        %682 = vmatpush.msra.mxu0 %v669
        %683 = vmatpush.msra.mxu0 %v668
        %684 = vmatpush.msra.mxu0 %v667
        %685 = vmatpush.msra.mxu0 %v666
        %686 = vmatpush.msra.mxu0 %v665
        %687 = vmatpush.msra.mxu0 %v664
        %688 = vmatpush.msra.mxu0 %v663
        %689 = vmatpush.msra.mxu0 %v662
        %690 = vmatpush.msra.mxu0 %v661
        %691 = vmatpush.msra.mxu0 %v660
        %692 = vmatmul.f32.gmra.mxu0 %v636
        %v693 = vpop.f32.mrf.mxu0
        %v694 = vadd.f32 0.0, %v693
        %695 = vmatmul.f32.gmra.mxu0 %v637
        %v696 = vpop.f32.mrf.mxu0
        %v697 = vadd.f32 0.0, %v696
        %698 = vmatmul.f32.gmra.mxu0 %v638
        %v699 = vpop.f32.mrf.mxu0
        %v700 = vadd.f32 0.0, %v699
        %701 = vdwg.mxu0
        %702 = vmatpush.msra.mxu0 %v658
        %703 = vmatpush.msra.mxu0 %v657
        %704 = vmatpush.msra.mxu0 %v656
        %705 = vmatpush.msra.mxu0 %v655
        %706 = vmatpush.msra.mxu0 %v654
        %707 = vmatpush.msra.mxu0 %v653
        %708 = vmatpush.msra.mxu0 %v652
        %709 = vmatpush.msra.mxu0 %v651
        %710 = vmatpush.msra.mxu0 %v650
        %711 = vmatpush.msra.mxu0 %v649
        %712 = vmatpush.msra.mxu0 %v648
        %713 = vmatpush.msra.mxu0 %v647
        %714 = vmatpush.msra.mxu0 %v646
        %715 = vmatpush.msra.mxu0 %v645
        %716 = vmatpush.msra.mxu0 %v644
        %717 = vmatpush.msra.mxu0 %v643
        %718 = vmatmul.f32.gmra.mxu0 %v633
        %v719 = vpop.f32.mrf.mxu0
        %v720 = vadd.f32 %v694, %v719
        %721 = vmatmul.f32.gmra.mxu0 %v634
        %v722 = vpop.f32.mrf.mxu0
        %v723 = vadd.f32 %v697, %v722
        %724 = vmatmul.f32.gmra.mxu0 %v635
        %v725 = vpop.f32.mrf.mxu0
        %v726 = vadd.f32 %v700, %v725
        %727 = vdwg.mxu0
        %s728 = scalar_lea.vmem [#allocation5], 1152
        %v729 = vld [vmem:[%s728] sm:$0xff]
        %v730 = vld [vmem:[%s728 + $0x8] sm:$0xff]
        %v731 = vld [vmem:[%s728 + $0x10] sm:$0xff]
        %v732 = vld [vmem:[%s728 + $0x18] sm:$0xff]
        %v733 = vld [vmem:[%s728 + $0x20] sm:$0xff]
        %v734 = vld [vmem:[%s728 + $0x28] sm:$0xff]
        %v735 = vld [vmem:[%s728 + $0x30] sm:$0xff]
        %v736 = vld [vmem:[%s728 + $0x38] sm:$0xff]
        %v737 = vld [vmem:[%s728 + $0x40] sm:$0xff]
        %v738 = vld [vmem:[%s728 + $0x48] sm:$0xff]
        %v739 = vld [vmem:[%s728 + $0x50] sm:$0xff]
        %v740 = vld [vmem:[%s728 + $0x58] sm:$0xff]
        %v741 = vld [vmem:[%s728 + $0x60] sm:$0xff]
        %v742 = vld [vmem:[%s728 + $0x68] sm:$0xff]
        %v743 = vld [vmem:[%s728 + $0x70] sm:$0xff]
        %v744 = vld [vmem:[%s728 + $0x78] sm:$0xff]
        %745 = vmatpush.msra.mxu0 %v744
        %746 = vmatpush.msra.mxu0 %v743
        %747 = vmatpush.msra.mxu0 %v742
        %748 = vmatpush.msra.mxu0 %v741
        %749 = vmatpush.msra.mxu0 %v740
        %750 = vmatpush.msra.mxu0 %v739
        %751 = vmatpush.msra.mxu0 %v738
        %752 = vmatpush.msra.mxu0 %v737
        %753 = vmatpush.msra.mxu0 %v736
        %754 = vmatpush.msra.mxu0 %v735
        %755 = vmatpush.msra.mxu0 %v734
        %756 = vmatpush.msra.mxu0 %v733
        %757 = vmatpush.msra.mxu0 %v732
        %758 = vmatpush.msra.mxu0 %v731
        %759 = vmatpush.msra.mxu0 %v730
        %760 = vmatpush.msra.mxu0 %v729
        %761 = vmatmul.f32.gmra.mxu0 %v639
        %v762 = vpop.f32.mrf.mxu0
        %v763 = vadd.f32 0.0, %v762
        %764 = vmatmul.f32.gmra.mxu0 %v640
        %v765 = vpop.f32.mrf.mxu0
        %v766 = vadd.f32 0.0, %v765
        %767 = vmatmul.f32.gmra.mxu0 %v641
        %v768 = vpop.f32.mrf.mxu0
        %v769 = vadd.f32 0.0, %v768
        %770 = vdwg.mxu0
        %v771 = vadd.f32 %v720, %v763
        %v772 = vadd.f32 %v723, %v766
        %v773 = vadd.f32 %v726, %v769
        %s774 = scalar_lea.vmem [#allocation7], 8
        %v775 = vld [vmem:[%s774] sm:$0x1]
        %v776 = vperm.slane %v775, 0
        %v777 = vadd.f32 %v771, %v776
        %v778 = vadd.f32 %v772, %v776
        %v779 = vadd.f32 %v773, %v776
        %v780 = vmax.f32 %v777, 0.0
        %v781 = vmax.f32 %v778, 0.0
        %v782 = vmax.f32 %v779, 0.0
        %783 = vst [vmem:[#allocation3 + $0x1] sm:$0xff] %v780
        %784 = vst [vmem:[#allocation3 + $0x9] sm:$0xff] %v781
        %785 = vst [vmem:[#allocation3 + $0x11] sm:$0x3] %v782
        %v786 = vld [vmem:[#allocation3] sm:$0xff]
        %v787 = vld [vmem:[#allocation3 + $0x8] sm:$0xff]
        %v788 = vld [vmem:[#allocation3 + $0x10] sm:$0x3]
        %v789 = vld [vmem:[#allocation3 + $0x1] sm:$0xff]
        %v790 = vld [vmem:[#allocation3 + $0x9] sm:$0xff]
        %v791 = vld [vmem:[#allocation3 + $0x11] sm:$0x3]
        %v792 = vld [vmem:[#allocation3 + $0x2] sm:$0xff]
        %v793 = vld [vmem:[#allocation3 + $0xa] sm:$0xff]
        %v794 = vld [vmem:[#allocation3 + $0x12] sm:$0x3]
        %s795 = scalar_lea.vmem [#allocation5], 1280
        %v796 = vld [vmem:[%s795] sm:$0xff]
        %v797 = vld [vmem:[%s795 + $0x8] sm:$0xff]
        %v798 = vld [vmem:[%s795 + $0x10] sm:$0xff]
        %v799 = vld [vmem:[%s795 + $0x18] sm:$0xff]
        %v800 = vld [vmem:[%s795 + $0x20] sm:$0xff]
        %v801 = vld [vmem:[%s795 + $0x28] sm:$0xff]
        %v802 = vld [vmem:[%s795 + $0x30] sm:$0xff]
        %v803 = vld [vmem:[%s795 + $0x38] sm:$0xff]
        %v804 = vld [vmem:[%s795 + $0x40] sm:$0xff]
        %v805 = vld [vmem:[%s795 + $0x48] sm:$0xff]
        %v806 = vld [vmem:[%s795 + $0x50] sm:$0xff]
        %v807 = vld [vmem:[%s795 + $0x58] sm:$0xff]
        %v808 = vld [vmem:[%s795 + $0x60] sm:$0xff]
        %v809 = vld [vmem:[%s795 + $0x68] sm:$0xff]
        %v810 = vld [vmem:[%s795 + $0x70] sm:$0xff]
        %v811 = vld [vmem:[%s795 + $0x78] sm:$0xff]
        %s812 = scalar_lea.vmem [#allocation5], 1408
        %v813 = vld [vmem:[%s812] sm:$0xff]
        %v814 = vld [vmem:[%s812 + $0x8] sm:$0xff]
        %v815 = vld [vmem:[%s812 + $0x10] sm:$0xff]
        %v816 = vld [vmem:[%s812 + $0x18] sm:$0xff]
        %v817 = vld [vmem:[%s812 + $0x20] sm:$0xff]
        %v818 = vld [vmem:[%s812 + $0x28] sm:$0xff]
        %v819 = vld [vmem:[%s812 + $0x30] sm:$0xff]
        %v820 = vld [vmem:[%s812 + $0x38] sm:$0xff]
        %v821 = vld [vmem:[%s812 + $0x40] sm:$0xff]
        %v822 = vld [vmem:[%s812 + $0x48] sm:$0xff]
        %v823 = vld [vmem:[%s812 + $0x50] sm:$0xff]
        %v824 = vld [vmem:[%s812 + $0x58] sm:$0xff]
        %v825 = vld [vmem:[%s812 + $0x60] sm:$0xff]
        %v826 = vld [vmem:[%s812 + $0x68] sm:$0xff]
        %v827 = vld [vmem:[%s812 + $0x70] sm:$0xff]
        %v828 = vld [vmem:[%s812 + $0x78] sm:$0xff]
        %829 = vmatpush.msra.mxu0 %v828
        %830 = vmatpush.msra.mxu0 %v827
        %831 = vmatpush.msra.mxu0 %v826
        %832 = vmatpush.msra.mxu0 %v825
        %833 = vmatpush.msra.mxu0 %v824
        %834 = vmatpush.msra.mxu0 %v823
        %835 = vmatpush.msra.mxu0 %v822
        %836 = vmatpush.msra.mxu0 %v821
        %837 = vmatpush.msra.mxu0 %v820
        %838 = vmatpush.msra.mxu0 %v819
        %839 = vmatpush.msra.mxu0 %v818
        %840 = vmatpush.msra.mxu0 %v817
        %841 = vmatpush.msra.mxu0 %v816
        %842 = vmatpush.msra.mxu0 %v815
        %843 = vmatpush.msra.mxu0 %v814
        %844 = vmatpush.msra.mxu0 %v813
        %845 = vmatmul.f32.gmra.mxu0 %v789
        %v846 = vpop.f32.mrf.mxu0
        %v847 = vadd.f32 0.0, %v846
        %848 = vmatmul.f32.gmra.mxu0 %v790
        %v849 = vpop.f32.mrf.mxu0
        %v850 = vadd.f32 0.0, %v849
        %851 = vmatmul.f32.gmra.mxu0 %v791
        %v852 = vpop.f32.mrf.mxu0
        %v853 = vadd.f32 0.0, %v852
        %854 = vdwg.mxu0
        %855 = vmatpush.msra.mxu0 %v811
        %856 = vmatpush.msra.mxu0 %v810
        %857 = vmatpush.msra.mxu0 %v809
        %858 = vmatpush.msra.mxu0 %v808
        %859 = vmatpush.msra.mxu0 %v807
        %860 = vmatpush.msra.mxu0 %v806
        %861 = vmatpush.msra.mxu0 %v805
        %862 = vmatpush.msra.mxu0 %v804
        %863 = vmatpush.msra.mxu0 %v803
        %864 = vmatpush.msra.mxu0 %v802
        %865 = vmatpush.msra.mxu0 %v801
        %866 = vmatpush.msra.mxu0 %v800
        %867 = vmatpush.msra.mxu0 %v799
        %868 = vmatpush.msra.mxu0 %v798
        %869 = vmatpush.msra.mxu0 %v797
        %870 = vmatpush.msra.mxu0 %v796
        %871 = vmatmul.f32.gmra.mxu0 %v786
        %v872 = vpop.f32.mrf.mxu0
        %v873 = vadd.f32 %v847, %v872
        %874 = vmatmul.f32.gmra.mxu0 %v787
        %v875 = vpop.f32.mrf.mxu0
        %v876 = vadd.f32 %v850, %v875
        %877 = vmatmul.f32.gmra.mxu0 %v788
        %v878 = vpop.f32.mrf.mxu0
        %v879 = vadd.f32 %v853, %v878
        %880 = vdwg.mxu0
        %s881 = scalar_lea.vmem [#allocation5], 1536
        %v882 = vld [vmem:[%s881] sm:$0xff]
        %v883 = vld [vmem:[%s881 + $0x8] sm:$0xff]
        %v884 = vld [vmem:[%s881 + $0x10] sm:$0xff]
        %v885 = vld [vmem:[%s881 + $0x18] sm:$0xff]
        %v886 = vld [vmem:[%s881 + $0x20] sm:$0xff]
        %v887 = vld [vmem:[%s881 + $0x28] sm:$0xff]
        %v888 = vld [vmem:[%s881 + $0x30] sm:$0xff]
        %v889 = vld [vmem:[%s881 + $0x38] sm:$0xff]
        %v890 = vld [vmem:[%s881 + $0x40] sm:$0xff]
        %v891 = vld [vmem:[%s881 + $0x48] sm:$0xff]
        %v892 = vld [vmem:[%s881 + $0x50] sm:$0xff]
        %v893 = vld [vmem:[%s881 + $0x58] sm:$0xff]
        %v894 = vld [vmem:[%s881 + $0x60] sm:$0xff]
        %v895 = vld [vmem:[%s881 + $0x68] sm:$0xff]
        %v896 = vld [vmem:[%s881 + $0x70] sm:$0xff]
        %v897 = vld [vmem:[%s881 + $0x78] sm:$0xff]
        %898 = vmatpush.msra.mxu0 %v897
        %899 = vmatpush.msra.mxu0 %v896
        %900 = vmatpush.msra.mxu0 %v895
        %901 = vmatpush.msra.mxu0 %v894
        %902 = vmatpush.msra.mxu0 %v893
        %903 = vmatpush.msra.mxu0 %v892
        %904 = vmatpush.msra.mxu0 %v891
        %905 = vmatpush.msra.mxu0 %v890
        %906 = vmatpush.msra.mxu0 %v889
        %907 = vmatpush.msra.mxu0 %v888
        %908 = vmatpush.msra.mxu0 %v887
        %909 = vmatpush.msra.mxu0 %v886
        %910 = vmatpush.msra.mxu0 %v885
        %911 = vmatpush.msra.mxu0 %v884
        %912 = vmatpush.msra.mxu0 %v883
        %913 = vmatpush.msra.mxu0 %v882
        %914 = vmatmul.f32.gmra.mxu0 %v792
        %v915 = vpop.f32.mrf.mxu0
        %v916 = vadd.f32 0.0, %v915
        %917 = vmatmul.f32.gmra.mxu0 %v793
        %v918 = vpop.f32.mrf.mxu0
        %v919 = vadd.f32 0.0, %v918
        %920 = vmatmul.f32.gmra.mxu0 %v794
        %v921 = vpop.f32.mrf.mxu0
        %v922 = vadd.f32 0.0, %v921
        %923 = vdwg.mxu0
        %v924 = vadd.f32 %v873, %v916
        %v925 = vadd.f32 %v876, %v919
        %v926 = vadd.f32 %v879, %v922
        %v927 = vld [vmem:[%s774 + $0x1] sm:$0x1]
        %v928 = vperm.slane %v927, 0
        %v929 = vadd.f32 %v924, %v928
        %v930 = vadd.f32 %v925, %v928
        %v931 = vadd.f32 %v926, %v928
        %v932 = vld [vmem:[#allocation2 + $0x1] sm:$0xff]
        %v933 = vld [vmem:[#allocation2 + $0x9] sm:$0xff]
        %v934 = vld [vmem:[#allocation2 + $0x11] sm:$0x3]
        %s935 = scalar_lea.vmem [#allocation5], 1664
        %v936 = vld [vmem:[%s935] sm:$0xff]
        %v937 = vld [vmem:[%s935 + $0x8] sm:$0xff]
        %v938 = vld [vmem:[%s935 + $0x10] sm:$0xff]
        %v939 = vld [vmem:[%s935 + $0x18] sm:$0xff]
        %v940 = vld [vmem:[%s935 + $0x20] sm:$0xff]
        %v941 = vld [vmem:[%s935 + $0x28] sm:$0xff]
        %v942 = vld [vmem:[%s935 + $0x30] sm:$0xff]
        %v943 = vld [vmem:[%s935 + $0x38] sm:$0xff]
        %v944 = vld [vmem:[%s935 + $0x40] sm:$0xff]
        %v945 = vld [vmem:[%s935 + $0x48] sm:$0xff]
        %v946 = vld [vmem:[%s935 + $0x50] sm:$0xff]
        %v947 = vld [vmem:[%s935 + $0x58] sm:$0xff]
        %v948 = vld [vmem:[%s935 + $0x60] sm:$0xff]
        %v949 = vld [vmem:[%s935 + $0x68] sm:$0xff]
        %v950 = vld [vmem:[%s935 + $0x70] sm:$0xff]
        %v951 = vld [vmem:[%s935 + $0x78] sm:$0xff]
        %v952 = vld [vmem:[%s774 + $0x2] sm:$0x1]
        %v953 = vperm.slane %v952, 0
        %954 = vmatpush.msra.mxu0 %v951
        %955 = vmatpush.msra.mxu0 %v950
        %956 = vmatpush.msra.mxu0 %v949
        %957 = vmatpush.msra.mxu0 %v948
        %958 = vmatpush.msra.mxu0 %v947
        %959 = vmatpush.msra.mxu0 %v946
        %960 = vmatpush.msra.mxu0 %v945
        %961 = vmatpush.msra.mxu0 %v944
        %962 = vmatpush.msra.mxu0 %v943
        %963 = vmatpush.msra.mxu0 %v942
        %964 = vmatpush.msra.mxu0 %v941
        %965 = vmatpush.msra.mxu0 %v940
        %966 = vmatpush.msra.mxu0 %v939
        %967 = vmatpush.msra.mxu0 %v938
        %968 = vmatpush.msra.mxu0 %v937
        %969 = vmatpush.msra.mxu0 %v936
        %970 = vmatmul.f32.gmra.mxu0 %v932
        %v971 = vpop.f32.mrf.mxu0
        %v972 = vadd.f32 %v953, %v971
        %973 = vmatmul.f32.gmra.mxu0 %v933
        %v974 = vpop.f32.mrf.mxu0
        %v975 = vadd.f32 %v953, %v974
        %976 = vmatmul.f32.gmra.mxu0 %v934
        %v977 = vpop.f32.mrf.mxu0
        %v978 = vadd.f32 %v953, %v977
        %979 = vdwg.mxu0
        %v980 = vadd.f32 %v929, %v972
        %v981 = vadd.f32 %v930, %v975
        %v982 = vadd.f32 %v931, %v978
        %v983 = vmax.f32 %v980, 0.0
        %v984 = vmax.f32 %v981, 0.0
        %v985 = vmax.f32 %v982, 0.0
        %986 = vst [vmem:[#allocation2 + $0x1] sm:$0xff] %v983
        %987 = vst [vmem:[#allocation2 + $0x9] sm:$0xff] %v984
        %988 = vst [vmem:[#allocation2 + $0x11] sm:$0x3] %v985
        %v989 = vld [vmem:[#allocation2] sm:$0xff]
        %v990 = vld [vmem:[#allocation2 + $0x8] sm:$0xff]
        %v991 = vld [vmem:[#allocation2 + $0x10] sm:$0x3]
        %v992 = vld [vmem:[#allocation2 + $0x1] sm:$0xff]
        %v993 = vld [vmem:[#allocation2 + $0x9] sm:$0xff]
        %v994 = vld [vmem:[#allocation2 + $0x11] sm:$0x3]
        %v995 = vld [vmem:[#allocation2 + $0x2] sm:$0xff]
        %v996 = vld [vmem:[#allocation2 + $0xa] sm:$0xff]
        %v997 = vld [vmem:[#allocation2 + $0x12] sm:$0x3]
        %s998 = scalar_lea.vmem [#allocation5], 1792
        %v999 = vld [vmem:[%s998] sm:$0xff]
        %v1000 = vld [vmem:[%s998 + $0x8] sm:$0xff]
        %v1001 = vld [vmem:[%s998 + $0x10] sm:$0xff]
        %v1002 = vld [vmem:[%s998 + $0x18] sm:$0xff]
        %v1003 = vld [vmem:[%s998 + $0x20] sm:$0xff]
        %v1004 = vld [vmem:[%s998 + $0x28] sm:$0xff]
        %v1005 = vld [vmem:[%s998 + $0x30] sm:$0xff]
        %v1006 = vld [vmem:[%s998 + $0x38] sm:$0xff]
        %v1007 = vld [vmem:[%s998 + $0x40] sm:$0xff]
        %v1008 = vld [vmem:[%s998 + $0x48] sm:$0xff]
        %v1009 = vld [vmem:[%s998 + $0x50] sm:$0xff]
        %v1010 = vld [vmem:[%s998 + $0x58] sm:$0xff]
        %v1011 = vld [vmem:[%s998 + $0x60] sm:$0xff]
        %v1012 = vld [vmem:[%s998 + $0x68] sm:$0xff]
        %v1013 = vld [vmem:[%s998 + $0x70] sm:$0xff]
        %v1014 = vld [vmem:[%s998 + $0x78] sm:$0xff]
        %s1015 = scalar_lea.vmem [#allocation5], 1920
        %v1016 = vld [vmem:[%s1015] sm:$0xff]
        %v1017 = vld [vmem:[%s1015 + $0x8] sm:$0xff]
        %v1018 = vld [vmem:[%s1015 + $0x10] sm:$0xff]
        %v1019 = vld [vmem:[%s1015 + $0x18] sm:$0xff]
        %v1020 = vld [vmem:[%s1015 + $0x20] sm:$0xff]
        %v1021 = vld [vmem:[%s1015 + $0x28] sm:$0xff]
        %v1022 = vld [vmem:[%s1015 + $0x30] sm:$0xff]
        %v1023 = vld [vmem:[%s1015 + $0x38] sm:$0xff]
        %v1024 = vld [vmem:[%s1015 + $0x40] sm:$0xff]
        %v1025 = vld [vmem:[%s1015 + $0x48] sm:$0xff]
        %v1026 = vld [vmem:[%s1015 + $0x50] sm:$0xff]
        %v1027 = vld [vmem:[%s1015 + $0x58] sm:$0xff]
        %v1028 = vld [vmem:[%s1015 + $0x60] sm:$0xff]
        %v1029 = vld [vmem:[%s1015 + $0x68] sm:$0xff]
        %v1030 = vld [vmem:[%s1015 + $0x70] sm:$0xff]
        %v1031 = vld [vmem:[%s1015 + $0x78] sm:$0xff]
        %1032 = vmatpush.msra.mxu0 %v1031
        %1033 = vmatpush.msra.mxu0 %v1030
        %1034 = vmatpush.msra.mxu0 %v1029
        %1035 = vmatpush.msra.mxu0 %v1028
        %1036 = vmatpush.msra.mxu0 %v1027
        %1037 = vmatpush.msra.mxu0 %v1026
        %1038 = vmatpush.msra.mxu0 %v1025
        %1039 = vmatpush.msra.mxu0 %v1024
        %1040 = vmatpush.msra.mxu0 %v1023
        %1041 = vmatpush.msra.mxu0 %v1022
        %1042 = vmatpush.msra.mxu0 %v1021
        %1043 = vmatpush.msra.mxu0 %v1020
        %1044 = vmatpush.msra.mxu0 %v1019
        %1045 = vmatpush.msra.mxu0 %v1018
        %1046 = vmatpush.msra.mxu0 %v1017
        %1047 = vmatpush.msra.mxu0 %v1016
        %1048 = vmatmul.f32.gmra.mxu0 %v992
        %v1049 = vpop.f32.mrf.mxu0
        %v1050 = vadd.f32 0.0, %v1049
        %1051 = vmatmul.f32.gmra.mxu0 %v993
        %v1052 = vpop.f32.mrf.mxu0
        %v1053 = vadd.f32 0.0, %v1052
        %1054 = vmatmul.f32.gmra.mxu0 %v994
        %v1055 = vpop.f32.mrf.mxu0
        %v1056 = vadd.f32 0.0, %v1055
        %1057 = vdwg.mxu0
        %1058 = vmatpush.msra.mxu0 %v1014
        %1059 = vmatpush.msra.mxu0 %v1013
        %1060 = vmatpush.msra.mxu0 %v1012
        %1061 = vmatpush.msra.mxu0 %v1011
        %1062 = vmatpush.msra.mxu0 %v1010
        %1063 = vmatpush.msra.mxu0 %v1009
        %1064 = vmatpush.msra.mxu0 %v1008
        %1065 = vmatpush.msra.mxu0 %v1007
        %1066 = vmatpush.msra.mxu0 %v1006
        %1067 = vmatpush.msra.mxu0 %v1005
        %1068 = vmatpush.msra.mxu0 %v1004
        %1069 = vmatpush.msra.mxu0 %v1003
        %1070 = vmatpush.msra.mxu0 %v1002
        %1071 = vmatpush.msra.mxu0 %v1001
        %1072 = vmatpush.msra.mxu0 %v1000
        %1073 = vmatpush.msra.mxu0 %v999
        %1074 = vmatmul.f32.gmra.mxu0 %v989
        %v1075 = vpop.f32.mrf.mxu0
        %v1076 = vadd.f32 %v1050, %v1075
        %1077 = vmatmul.f32.gmra.mxu0 %v990
        %v1078 = vpop.f32.mrf.mxu0
        %v1079 = vadd.f32 %v1053, %v1078
        %1080 = vmatmul.f32.gmra.mxu0 %v991
        %v1081 = vpop.f32.mrf.mxu0
        %v1082 = vadd.f32 %v1056, %v1081
        %1083 = vdwg.mxu0
        %s1084 = scalar_lea.vmem [#allocation5], 2048
        %v1085 = vld [vmem:[%s1084] sm:$0xff]
        %v1086 = vld [vmem:[%s1084 + $0x8] sm:$0xff]
        %v1087 = vld [vmem:[%s1084 + $0x10] sm:$0xff]
        %v1088 = vld [vmem:[%s1084 + $0x18] sm:$0xff]
        %v1089 = vld [vmem:[%s1084 + $0x20] sm:$0xff]
        %v1090 = vld [vmem:[%s1084 + $0x28] sm:$0xff]
        %v1091 = vld [vmem:[%s1084 + $0x30] sm:$0xff]
        %v1092 = vld [vmem:[%s1084 + $0x38] sm:$0xff]
        %v1093 = vld [vmem:[%s1084 + $0x40] sm:$0xff]
        %v1094 = vld [vmem:[%s1084 + $0x48] sm:$0xff]
        %v1095 = vld [vmem:[%s1084 + $0x50] sm:$0xff]
        %v1096 = vld [vmem:[%s1084 + $0x58] sm:$0xff]
        %v1097 = vld [vmem:[%s1084 + $0x60] sm:$0xff]
        %v1098 = vld [vmem:[%s1084 + $0x68] sm:$0xff]
        %v1099 = vld [vmem:[%s1084 + $0x70] sm:$0xff]
        %v1100 = vld [vmem:[%s1084 + $0x78] sm:$0xff]
        %1101 = vmatpush.msra.mxu0 %v1100
        %1102 = vmatpush.msra.mxu0 %v1099
        %1103 = vmatpush.msra.mxu0 %v1098
        %1104 = vmatpush.msra.mxu0 %v1097
        %1105 = vmatpush.msra.mxu0 %v1096
        %1106 = vmatpush.msra.mxu0 %v1095
        %1107 = vmatpush.msra.mxu0 %v1094
        %1108 = vmatpush.msra.mxu0 %v1093
        %1109 = vmatpush.msra.mxu0 %v1092
        %1110 = vmatpush.msra.mxu0 %v1091
        %1111 = vmatpush.msra.mxu0 %v1090
        %1112 = vmatpush.msra.mxu0 %v1089
        %1113 = vmatpush.msra.mxu0 %v1088
        %1114 = vmatpush.msra.mxu0 %v1087
        %1115 = vmatpush.msra.mxu0 %v1086
        %1116 = vmatpush.msra.mxu0 %v1085
        %1117 = vmatmul.f32.gmra.mxu0 %v995
        %v1118 = vpop.f32.mrf.mxu0
        %v1119 = vadd.f32 0.0, %v1118
        %1120 = vmatmul.f32.gmra.mxu0 %v996
        %v1121 = vpop.f32.mrf.mxu0
        %v1122 = vadd.f32 0.0, %v1121
        %1123 = vmatmul.f32.gmra.mxu0 %v997
        %v1124 = vpop.f32.mrf.mxu0
        %v1125 = vadd.f32 0.0, %v1124
        %1126 = vdwg.mxu0
        %v1127 = vadd.f32 %v1076, %v1119
        %v1128 = vadd.f32 %v1079, %v1122
        %v1129 = vadd.f32 %v1082, %v1125
        %s1130 = scalar_lea.vmem [#allocation7], 16
        %v1131 = vld [vmem:[%s1130] sm:$0x1]
        %v1132 = vperm.slane %v1131, 0
        %v1133 = vadd.f32 %v1127, %v1132
        %v1134 = vadd.f32 %v1128, %v1132
        %v1135 = vadd.f32 %v1129, %v1132
        %v1136 = vmax.f32 %v1133, 0.0
        %v1137 = vmax.f32 %v1134, 0.0
        %v1138 = vmax.f32 %v1135, 0.0
        %1139 = vst [vmem:[#allocation3 + $0x1] sm:$0xff] %v1136
        %1140 = vst [vmem:[#allocation3 + $0x9] sm:$0xff] %v1137
        %1141 = vst [vmem:[#allocation3 + $0x11] sm:$0x3] %v1138
        %v1142 = vld [vmem:[#allocation3] sm:$0xff]
        %v1143 = vld [vmem:[#allocation3 + $0x8] sm:$0xff]
        %v1144 = vld [vmem:[#allocation3 + $0x10] sm:$0x3]
        %v1145 = vld [vmem:[#allocation3 + $0x1] sm:$0xff]
        %v1146 = vld [vmem:[#allocation3 + $0x9] sm:$0xff]
        %v1147 = vld [vmem:[#allocation3 + $0x11] sm:$0x3]
        %v1148 = vld [vmem:[#allocation3 + $0x2] sm:$0xff]
        %v1149 = vld [vmem:[#allocation3 + $0xa] sm:$0xff]
        %v1150 = vld [vmem:[#allocation3 + $0x12] sm:$0x3]
        %s1151 = scalar_lea.vmem [#allocation5], 2176
        %v1152 = vld [vmem:[%s1151] sm:$0xff]
        %v1153 = vld [vmem:[%s1151 + $0x8] sm:$0xff]
        %v1154 = vld [vmem:[%s1151 + $0x10] sm:$0xff]
        %v1155 = vld [vmem:[%s1151 + $0x18] sm:$0xff]
        %v1156 = vld [vmem:[%s1151 + $0x20] sm:$0xff]
        %v1157 = vld [vmem:[%s1151 + $0x28] sm:$0xff]
        %v1158 = vld [vmem:[%s1151 + $0x30] sm:$0xff]
        %v1159 = vld [vmem:[%s1151 + $0x38] sm:$0xff]
        %v1160 = vld [vmem:[%s1151 + $0x40] sm:$0xff]
        %v1161 = vld [vmem:[%s1151 + $0x48] sm:$0xff]
        %v1162 = vld [vmem:[%s1151 + $0x50] sm:$0xff]
        %v1163 = vld [vmem:[%s1151 + $0x58] sm:$0xff]
        %v1164 = vld [vmem:[%s1151 + $0x60] sm:$0xff]
        %v1165 = vld [vmem:[%s1151 + $0x68] sm:$0xff]
        %v1166 = vld [vmem:[%s1151 + $0x70] sm:$0xff]
        %v1167 = vld [vmem:[%s1151 + $0x78] sm:$0xff]
        %s1168 = scalar_lea.vmem [#allocation5], 2304
        %v1169 = vld [vmem:[%s1168] sm:$0xff]
        %v1170 = vld [vmem:[%s1168 + $0x8] sm:$0xff]
        %v1171 = vld [vmem:[%s1168 + $0x10] sm:$0xff]
        %v1172 = vld [vmem:[%s1168 + $0x18] sm:$0xff]
        %v1173 = vld [vmem:[%s1168 + $0x20] sm:$0xff]
        %v1174 = vld [vmem:[%s1168 + $0x28] sm:$0xff]
        %v1175 = vld [vmem:[%s1168 + $0x30] sm:$0xff]
        %v1176 = vld [vmem:[%s1168 + $0x38] sm:$0xff]
        %v1177 = vld [vmem:[%s1168 + $0x40] sm:$0xff]
        %v1178 = vld [vmem:[%s1168 + $0x48] sm:$0xff]
        %v1179 = vld [vmem:[%s1168 + $0x50] sm:$0xff]
        %v1180 = vld [vmem:[%s1168 + $0x58] sm:$0xff]
        %v1181 = vld [vmem:[%s1168 + $0x60] sm:$0xff]
        %v1182 = vld [vmem:[%s1168 + $0x68] sm:$0xff]
        %v1183 = vld [vmem:[%s1168 + $0x70] sm:$0xff]
        %v1184 = vld [vmem:[%s1168 + $0x78] sm:$0xff]
        %1185 = vmatpush.msra.mxu0 %v1184
        %1186 = vmatpush.msra.mxu0 %v1183
        %1187 = vmatpush.msra.mxu0 %v1182
        %1188 = vmatpush.msra.mxu0 %v1181
        %1189 = vmatpush.msra.mxu0 %v1180
        %1190 = vmatpush.msra.mxu0 %v1179
        %1191 = vmatpush.msra.mxu0 %v1178
        %1192 = vmatpush.msra.mxu0 %v1177
        %1193 = vmatpush.msra.mxu0 %v1176
        %1194 = vmatpush.msra.mxu0 %v1175
        %1195 = vmatpush.msra.mxu0 %v1174
        %1196 = vmatpush.msra.mxu0 %v1173
        %1197 = vmatpush.msra.mxu0 %v1172
        %1198 = vmatpush.msra.mxu0 %v1171
        %1199 = vmatpush.msra.mxu0 %v1170
        %1200 = vmatpush.msra.mxu0 %v1169
        %1201 = vmatmul.f32.gmra.mxu0 %v1145
        %v1202 = vpop.f32.mrf.mxu0
        %v1203 = vadd.f32 0.0, %v1202
        %1204 = vmatmul.f32.gmra.mxu0 %v1146
        %v1205 = vpop.f32.mrf.mxu0
        %v1206 = vadd.f32 0.0, %v1205
        %1207 = vmatmul.f32.gmra.mxu0 %v1147
        %v1208 = vpop.f32.mrf.mxu0
        %v1209 = vadd.f32 0.0, %v1208
        %1210 = vdwg.mxu0
        %1211 = vmatpush.msra.mxu0 %v1167
        %1212 = vmatpush.msra.mxu0 %v1166
        %1213 = vmatpush.msra.mxu0 %v1165
        %1214 = vmatpush.msra.mxu0 %v1164
        %1215 = vmatpush.msra.mxu0 %v1163
        %1216 = vmatpush.msra.mxu0 %v1162
        %1217 = vmatpush.msra.mxu0 %v1161
        %1218 = vmatpush.msra.mxu0 %v1160
        %1219 = vmatpush.msra.mxu0 %v1159
        %1220 = vmatpush.msra.mxu0 %v1158
        %1221 = vmatpush.msra.mxu0 %v1157
        %1222 = vmatpush.msra.mxu0 %v1156
        %1223 = vmatpush.msra.mxu0 %v1155
        %1224 = vmatpush.msra.mxu0 %v1154
        %1225 = vmatpush.msra.mxu0 %v1153
        %1226 = vmatpush.msra.mxu0 %v1152
        %1227 = vmatmul.f32.gmra.mxu0 %v1142
        %v1228 = vpop.f32.mrf.mxu0
        %v1229 = vadd.f32 %v1203, %v1228
        %1230 = vmatmul.f32.gmra.mxu0 %v1143
        %v1231 = vpop.f32.mrf.mxu0
        %v1232 = vadd.f32 %v1206, %v1231
        %1233 = vmatmul.f32.gmra.mxu0 %v1144
        %v1234 = vpop.f32.mrf.mxu0
        %v1235 = vadd.f32 %v1209, %v1234
        %1236 = vdwg.mxu0
        %s1237 = scalar_lea.vmem [#allocation5], 2432
        %v1238 = vld [vmem:[%s1237] sm:$0xff]
        %v1239 = vld [vmem:[%s1237 + $0x8] sm:$0xff]
        %v1240 = vld [vmem:[%s1237 + $0x10] sm:$0xff]
        %v1241 = vld [vmem:[%s1237 + $0x18] sm:$0xff]
        %v1242 = vld [vmem:[%s1237 + $0x20] sm:$0xff]
        %v1243 = vld [vmem:[%s1237 + $0x28] sm:$0xff]
        %v1244 = vld [vmem:[%s1237 + $0x30] sm:$0xff]
        %v1245 = vld [vmem:[%s1237 + $0x38] sm:$0xff]
        %v1246 = vld [vmem:[%s1237 + $0x40] sm:$0xff]
        %v1247 = vld [vmem:[%s1237 + $0x48] sm:$0xff]
        %v1248 = vld [vmem:[%s1237 + $0x50] sm:$0xff]
        %v1249 = vld [vmem:[%s1237 + $0x58] sm:$0xff]
        %v1250 = vld [vmem:[%s1237 + $0x60] sm:$0xff]
        %v1251 = vld [vmem:[%s1237 + $0x68] sm:$0xff]
        %v1252 = vld [vmem:[%s1237 + $0x70] sm:$0xff]
        %v1253 = vld [vmem:[%s1237 + $0x78] sm:$0xff]
        %1254 = vmatpush.msra.mxu0 %v1253
        %1255 = vmatpush.msra.mxu0 %v1252
        %1256 = vmatpush.msra.mxu0 %v1251
        %1257 = vmatpush.msra.mxu0 %v1250
        %1258 = vmatpush.msra.mxu0 %v1249
        %1259 = vmatpush.msra.mxu0 %v1248
        %1260 = vmatpush.msra.mxu0 %v1247
        %1261 = vmatpush.msra.mxu0 %v1246
        %1262 = vmatpush.msra.mxu0 %v1245
        %1263 = vmatpush.msra.mxu0 %v1244
        %1264 = vmatpush.msra.mxu0 %v1243
        %1265 = vmatpush.msra.mxu0 %v1242
        %1266 = vmatpush.msra.mxu0 %v1241
        %1267 = vmatpush.msra.mxu0 %v1240
        %1268 = vmatpush.msra.mxu0 %v1239
        %1269 = vmatpush.msra.mxu0 %v1238
        %1270 = vmatmul.f32.gmra.mxu0 %v1148
        %v1271 = vpop.f32.mrf.mxu0
        %v1272 = vadd.f32 0.0, %v1271
        %1273 = vmatmul.f32.gmra.mxu0 %v1149
        %v1274 = vpop.f32.mrf.mxu0
        %v1275 = vadd.f32 0.0, %v1274
        %1276 = vmatmul.f32.gmra.mxu0 %v1150
        %v1277 = vpop.f32.mrf.mxu0
        %v1278 = vadd.f32 0.0, %v1277
        %1279 = vdwg.mxu0
        %v1280 = vadd.f32 %v1229, %v1272
        %v1281 = vadd.f32 %v1232, %v1275
        %v1282 = vadd.f32 %v1235, %v1278
        %v1283 = vld [vmem:[%s1130 + $0x1] sm:$0x1]
        %v1284 = vperm.slane %v1283, 0
        %v1285 = vadd.f32 %v1280, %v1284
        %v1286 = vadd.f32 %v1281, %v1284
        %v1287 = vadd.f32 %v1282, %v1284
        %v1288 = vld [vmem:[#allocation2 + $0x1] sm:$0xff]
        %v1289 = vld [vmem:[#allocation2 + $0x9] sm:$0xff]
        %v1290 = vld [vmem:[#allocation2 + $0x11] sm:$0x3]
        %s1291 = scalar_lea.vmem [#allocation5], 2560
        %v1292 = vld [vmem:[%s1291] sm:$0xff]
        %v1293 = vld [vmem:[%s1291 + $0x8] sm:$0xff]
        %v1294 = vld [vmem:[%s1291 + $0x10] sm:$0xff]
        %v1295 = vld [vmem:[%s1291 + $0x18] sm:$0xff]
        %v1296 = vld [vmem:[%s1291 + $0x20] sm:$0xff]
        %v1297 = vld [vmem:[%s1291 + $0x28] sm:$0xff]
        %v1298 = vld [vmem:[%s1291 + $0x30] sm:$0xff]
        %v1299 = vld [vmem:[%s1291 + $0x38] sm:$0xff]
        %v1300 = vld [vmem:[%s1291 + $0x40] sm:$0xff]
        %v1301 = vld [vmem:[%s1291 + $0x48] sm:$0xff]
        %v1302 = vld [vmem:[%s1291 + $0x50] sm:$0xff]
        %v1303 = vld [vmem:[%s1291 + $0x58] sm:$0xff]
        %v1304 = vld [vmem:[%s1291 + $0x60] sm:$0xff]
        %v1305 = vld [vmem:[%s1291 + $0x68] sm:$0xff]
        %v1306 = vld [vmem:[%s1291 + $0x70] sm:$0xff]
        %v1307 = vld [vmem:[%s1291 + $0x78] sm:$0xff]
        %v1308 = vld [vmem:[%s1130 + $0x2] sm:$0x1]
        %v1309 = vperm.slane %v1308, 0
        %1310 = vmatpush.msra.mxu0 %v1307
        %1311 = vmatpush.msra.mxu0 %v1306
        %1312 = vmatpush.msra.mxu0 %v1305
        %1313 = vmatpush.msra.mxu0 %v1304
        %1314 = vmatpush.msra.mxu0 %v1303
        %1315 = vmatpush.msra.mxu0 %v1302
        %1316 = vmatpush.msra.mxu0 %v1301
        %1317 = vmatpush.msra.mxu0 %v1300
        %1318 = vmatpush.msra.mxu0 %v1299
        %1319 = vmatpush.msra.mxu0 %v1298
        %1320 = vmatpush.msra.mxu0 %v1297
        %1321 = vmatpush.msra.mxu0 %v1296
        %1322 = vmatpush.msra.mxu0 %v1295
        %1323 = vmatpush.msra.mxu0 %v1294
        %1324 = vmatpush.msra.mxu0 %v1293
        %1325 = vmatpush.msra.mxu0 %v1292
        %1326 = vmatmul.f32.gmra.mxu0 %v1288
        %v1327 = vpop.f32.mrf.mxu0
        %v1328 = vadd.f32 %v1309, %v1327
        %1329 = vmatmul.f32.gmra.mxu0 %v1289
        %v1330 = vpop.f32.mrf.mxu0
        %v1331 = vadd.f32 %v1309, %v1330
        %1332 = vmatmul.f32.gmra.mxu0 %v1290
        %v1333 = vpop.f32.mrf.mxu0
        %v1334 = vadd.f32 %v1309, %v1333
        %1335 = vdwg.mxu0
        %v1336 = vadd.f32 %v1285, %v1328
        %v1337 = vadd.f32 %v1286, %v1331
        %v1338 = vadd.f32 %v1287, %v1334
        %v1339 = vmax.f32 %v1336, 0.0
        %v1340 = vmax.f32 %v1337, 0.0
        %v1341 = vmax.f32 %v1338, 0.0
        %1342 = vst [vmem:[#allocation2 + $0x1] sm:$0xff] %v1339
        %1343 = vst [vmem:[#allocation2 + $0x9] sm:$0xff] %v1340
        %1344 = vst [vmem:[#allocation2 + $0x11] sm:$0x3] %v1341
        %v1345 = vld [vmem:[#allocation2] sm:$0xff]
        %v1346 = vld [vmem:[#allocation2 + $0x8] sm:$0xff]
        %v1347 = vld [vmem:[#allocation2 + $0x10] sm:$0x3]
        %v1348 = vld [vmem:[#allocation2 + $0x1] sm:$0xff]
        %v1349 = vld [vmem:[#allocation2 + $0x9] sm:$0xff]
        %v1350 = vld [vmem:[#allocation2 + $0x11] sm:$0x3]
        %v1351 = vld [vmem:[#allocation2 + $0x2] sm:$0xff]
        %v1352 = vld [vmem:[#allocation2 + $0xa] sm:$0xff]
        %v1353 = vld [vmem:[#allocation2 + $0x12] sm:$0x3]
        %s1354 = scalar_lea.vmem [#allocation5], 2688
        %v1355 = vld [vmem:[%s1354] sm:$0xff]
        %v1356 = vld [vmem:[%s1354 + $0x8] sm:$0xff]
        %v1357 = vld [vmem:[%s1354 + $0x10] sm:$0xff]
        %v1358 = vld [vmem:[%s1354 + $0x18] sm:$0xff]
        %v1359 = vld [vmem:[%s1354 + $0x20] sm:$0xff]
        %v1360 = vld [vmem:[%s1354 + $0x28] sm:$0xff]
        %v1361 = vld [vmem:[%s1354 + $0x30] sm:$0xff]
        %v1362 = vld [vmem:[%s1354 + $0x38] sm:$0xff]
        %v1363 = vld [vmem:[%s1354 + $0x40] sm:$0xff]
        %v1364 = vld [vmem:[%s1354 + $0x48] sm:$0xff]
        %v1365 = vld [vmem:[%s1354 + $0x50] sm:$0xff]
        %v1366 = vld [vmem:[%s1354 + $0x58] sm:$0xff]
        %v1367 = vld [vmem:[%s1354 + $0x60] sm:$0xff]
        %v1368 = vld [vmem:[%s1354 + $0x68] sm:$0xff]
        %v1369 = vld [vmem:[%s1354 + $0x70] sm:$0xff]
        %v1370 = vld [vmem:[%s1354 + $0x78] sm:$0xff]
        %s1371 = scalar_lea.vmem [#allocation5], 2816
        %v1372 = vld [vmem:[%s1371] sm:$0xff]
        %v1373 = vld [vmem:[%s1371 + $0x8] sm:$0xff]
        %v1374 = vld [vmem:[%s1371 + $0x10] sm:$0xff]
        %v1375 = vld [vmem:[%s1371 + $0x18] sm:$0xff]
        %v1376 = vld [vmem:[%s1371 + $0x20] sm:$0xff]
        %v1377 = vld [vmem:[%s1371 + $0x28] sm:$0xff]
        %v1378 = vld [vmem:[%s1371 + $0x30] sm:$0xff]
        %v1379 = vld [vmem:[%s1371 + $0x38] sm:$0xff]
        %v1380 = vld [vmem:[%s1371 + $0x40] sm:$0xff]
        %v1381 = vld [vmem:[%s1371 + $0x48] sm:$0xff]
        %v1382 = vld [vmem:[%s1371 + $0x50] sm:$0xff]
        %v1383 = vld [vmem:[%s1371 + $0x58] sm:$0xff]
        %v1384 = vld [vmem:[%s1371 + $0x60] sm:$0xff]
        %v1385 = vld [vmem:[%s1371 + $0x68] sm:$0xff]
        %v1386 = vld [vmem:[%s1371 + $0x70] sm:$0xff]
        %v1387 = vld [vmem:[%s1371 + $0x78] sm:$0xff]
        %1388 = vmatpush.msra.mxu0 %v1387
        %1389 = vmatpush.msra.mxu0 %v1386
        %1390 = vmatpush.msra.mxu0 %v1385
        %1391 = vmatpush.msra.mxu0 %v1384
        %1392 = vmatpush.msra.mxu0 %v1383
        %1393 = vmatpush.msra.mxu0 %v1382
        %1394 = vmatpush.msra.mxu0 %v1381
        %1395 = vmatpush.msra.mxu0 %v1380
        %1396 = vmatpush.msra.mxu0 %v1379
        %1397 = vmatpush.msra.mxu0 %v1378
        %1398 = vmatpush.msra.mxu0 %v1377
        %1399 = vmatpush.msra.mxu0 %v1376
        %1400 = vmatpush.msra.mxu0 %v1375
        %1401 = vmatpush.msra.mxu0 %v1374
        %1402 = vmatpush.msra.mxu0 %v1373
        %1403 = vmatpush.msra.mxu0 %v1372
        %1404 = vmatmul.f32.gmra.mxu0 %v1348
        %v1405 = vpop.f32.mrf.mxu0
        %v1406 = vadd.f32 0.0, %v1405
        %1407 = vmatmul.f32.gmra.mxu0 %v1349
        %v1408 = vpop.f32.mrf.mxu0
        %v1409 = vadd.f32 0.0, %v1408
        %1410 = vmatmul.f32.gmra.mxu0 %v1350
        %v1411 = vpop.f32.mrf.mxu0
        %v1412 = vadd.f32 0.0, %v1411
        %1413 = vdwg.mxu0
        %1414 = vmatpush.msra.mxu0 %v1370
        %1415 = vmatpush.msra.mxu0 %v1369
        %1416 = vmatpush.msra.mxu0 %v1368
        %1417 = vmatpush.msra.mxu0 %v1367
        %1418 = vmatpush.msra.mxu0 %v1366
        %1419 = vmatpush.msra.mxu0 %v1365
        %1420 = vmatpush.msra.mxu0 %v1364
        %1421 = vmatpush.msra.mxu0 %v1363
        %1422 = vmatpush.msra.mxu0 %v1362
        %1423 = vmatpush.msra.mxu0 %v1361
        %1424 = vmatpush.msra.mxu0 %v1360
        %1425 = vmatpush.msra.mxu0 %v1359
        %1426 = vmatpush.msra.mxu0 %v1358
        %1427 = vmatpush.msra.mxu0 %v1357
        %1428 = vmatpush.msra.mxu0 %v1356
        %1429 = vmatpush.msra.mxu0 %v1355
        %1430 = vmatmul.f32.gmra.mxu0 %v1345
        %v1431 = vpop.f32.mrf.mxu0
        %v1432 = vadd.f32 %v1406, %v1431
        %1433 = vmatmul.f32.gmra.mxu0 %v1346
        %v1434 = vpop.f32.mrf.mxu0
        %v1435 = vadd.f32 %v1409, %v1434
        %1436 = vmatmul.f32.gmra.mxu0 %v1347
        %v1437 = vpop.f32.mrf.mxu0
        %v1438 = vadd.f32 %v1412, %v1437
        %1439 = vdwg.mxu0
        %s1440 = scalar_lea.vmem [#allocation5], 2944
        %v1441 = vld [vmem:[%s1440] sm:$0xff]
        %v1442 = vld [vmem:[%s1440 + $0x8] sm:$0xff]
        %v1443 = vld [vmem:[%s1440 + $0x10] sm:$0xff]
        %v1444 = vld [vmem:[%s1440 + $0x18] sm:$0xff]
        %v1445 = vld [vmem:[%s1440 + $0x20] sm:$0xff]
        %v1446 = vld [vmem:[%s1440 + $0x28] sm:$0xff]
        %v1447 = vld [vmem:[%s1440 + $0x30] sm:$0xff]
        %v1448 = vld [vmem:[%s1440 + $0x38] sm:$0xff]
        %v1449 = vld [vmem:[%s1440 + $0x40] sm:$0xff]
        %v1450 = vld [vmem:[%s1440 + $0x48] sm:$0xff]
        %v1451 = vld [vmem:[%s1440 + $0x50] sm:$0xff]
        %v1452 = vld [vmem:[%s1440 + $0x58] sm:$0xff]
        %v1453 = vld [vmem:[%s1440 + $0x60] sm:$0xff]
        %v1454 = vld [vmem:[%s1440 + $0x68] sm:$0xff]
        %v1455 = vld [vmem:[%s1440 + $0x70] sm:$0xff]
        %v1456 = vld [vmem:[%s1440 + $0x78] sm:$0xff]
        %1457 = vmatpush.msra.mxu0 %v1456
        %1458 = vmatpush.msra.mxu0 %v1455
        %1459 = vmatpush.msra.mxu0 %v1454
        %1460 = vmatpush.msra.mxu0 %v1453
        %1461 = vmatpush.msra.mxu0 %v1452
        %1462 = vmatpush.msra.mxu0 %v1451
        %1463 = vmatpush.msra.mxu0 %v1450
        %1464 = vmatpush.msra.mxu0 %v1449
        %1465 = vmatpush.msra.mxu0 %v1448
        %1466 = vmatpush.msra.mxu0 %v1447
        %1467 = vmatpush.msra.mxu0 %v1446
        %1468 = vmatpush.msra.mxu0 %v1445
        %1469 = vmatpush.msra.mxu0 %v1444
        %1470 = vmatpush.msra.mxu0 %v1443
        %1471 = vmatpush.msra.mxu0 %v1442
        %1472 = vmatpush.msra.mxu0 %v1441
        %1473 = vmatmul.f32.gmra.mxu0 %v1351
        %v1474 = vpop.f32.mrf.mxu0
        %v1475 = vadd.f32 0.0, %v1474
        %1476 = vmatmul.f32.gmra.mxu0 %v1352
        %v1477 = vpop.f32.mrf.mxu0
        %v1478 = vadd.f32 0.0, %v1477
        %1479 = vmatmul.f32.gmra.mxu0 %v1353
        %v1480 = vpop.f32.mrf.mxu0
        %v1481 = vadd.f32 0.0, %v1480
        %1482 = vdwg.mxu0
        %v1483 = vadd.f32 %v1432, %v1475
        %v1484 = vadd.f32 %v1435, %v1478
        %v1485 = vadd.f32 %v1438, %v1481
        %s1486 = scalar_lea.vmem [#allocation7], 24
        %v1487 = vld [vmem:[%s1486] sm:$0x1]
        %v1488 = vperm.slane %v1487, 0
        %v1489 = vadd.f32 %v1483, %v1488
        %v1490 = vadd.f32 %v1484, %v1488
        %v1491 = vadd.f32 %v1485, %v1488
        %v1492 = vmax.f32 %v1489, 0.0
        %v1493 = vmax.f32 %v1490, 0.0
        %v1494 = vmax.f32 %v1491, 0.0
        %1495 = vst [vmem:[#allocation3 + $0x1] sm:$0xff] %v1492
        %1496 = vst [vmem:[#allocation3 + $0x9] sm:$0xff] %v1493
        %1497 = vst [vmem:[#allocation3 + $0x11] sm:$0x3] %v1494
        %v1498 = vld [vmem:[#allocation3] sm:$0xff]
        %v1499 = vld [vmem:[#allocation3 + $0x8] sm:$0xff]
        %v1500 = vld [vmem:[#allocation3 + $0x10] sm:$0x3]
        %v1501 = vld [vmem:[#allocation3 + $0x1] sm:$0xff]
        %v1502 = vld [vmem:[#allocation3 + $0x9] sm:$0xff]
        %v1503 = vld [vmem:[#allocation3 + $0x11] sm:$0x3]
        %v1504 = vld [vmem:[#allocation3 + $0x2] sm:$0xff]
        %v1505 = vld [vmem:[#allocation3 + $0xa] sm:$0xff]
        %v1506 = vld [vmem:[#allocation3 + $0x12] sm:$0x3]
        %s1507 = scalar_lea.vmem [#allocation5], 3072
        %v1508 = vld [vmem:[%s1507] sm:$0xff]
        %v1509 = vld [vmem:[%s1507 + $0x8] sm:$0xff]
        %v1510 = vld [vmem:[%s1507 + $0x10] sm:$0xff]
        %v1511 = vld [vmem:[%s1507 + $0x18] sm:$0xff]
        %v1512 = vld [vmem:[%s1507 + $0x20] sm:$0xff]
        %v1513 = vld [vmem:[%s1507 + $0x28] sm:$0xff]
        %v1514 = vld [vmem:[%s1507 + $0x30] sm:$0xff]
        %v1515 = vld [vmem:[%s1507 + $0x38] sm:$0xff]
        %v1516 = vld [vmem:[%s1507 + $0x40] sm:$0xff]
        %v1517 = vld [vmem:[%s1507 + $0x48] sm:$0xff]
        %v1518 = vld [vmem:[%s1507 + $0x50] sm:$0xff]
        %v1519 = vld [vmem:[%s1507 + $0x58] sm:$0xff]
        %v1520 = vld [vmem:[%s1507 + $0x60] sm:$0xff]
        %v1521 = vld [vmem:[%s1507 + $0x68] sm:$0xff]
        %v1522 = vld [vmem:[%s1507 + $0x70] sm:$0xff]
        %v1523 = vld [vmem:[%s1507 + $0x78] sm:$0xff]
        %s1524 = scalar_lea.vmem [#allocation5], 3200
        %v1525 = vld [vmem:[%s1524] sm:$0xff]
        %v1526 = vld [vmem:[%s1524 + $0x8] sm:$0xff]
        %v1527 = vld [vmem:[%s1524 + $0x10] sm:$0xff]
        %v1528 = vld [vmem:[%s1524 + $0x18] sm:$0xff]
        %v1529 = vld [vmem:[%s1524 + $0x20] sm:$0xff]
        %v1530 = vld [vmem:[%s1524 + $0x28] sm:$0xff]
        %v1531 = vld [vmem:[%s1524 + $0x30] sm:$0xff]
        %v1532 = vld [vmem:[%s1524 + $0x38] sm:$0xff]
        %v1533 = vld [vmem:[%s1524 + $0x40] sm:$0xff]
        %v1534 = vld [vmem:[%s1524 + $0x48] sm:$0xff]
        %v1535 = vld [vmem:[%s1524 + $0x50] sm:$0xff]
        %v1536 = vld [vmem:[%s1524 + $0x58] sm:$0xff]
        %v1537 = vld [vmem:[%s1524 + $0x60] sm:$0xff]
        %v1538 = vld [vmem:[%s1524 + $0x68] sm:$0xff]
        %v1539 = vld [vmem:[%s1524 + $0x70] sm:$0xff]
        %v1540 = vld [vmem:[%s1524 + $0x78] sm:$0xff]
        %1541 = vmatpush.msra.mxu0 %v1540
        %1542 = vmatpush.msra.mxu0 %v1539
        %1543 = vmatpush.msra.mxu0 %v1538
        %1544 = vmatpush.msra.mxu0 %v1537
        %1545 = vmatpush.msra.mxu0 %v1536
        %1546 = vmatpush.msra.mxu0 %v1535
        %1547 = vmatpush.msra.mxu0 %v1534
        %1548 = vmatpush.msra.mxu0 %v1533
        %1549 = vmatpush.msra.mxu0 %v1532
        %1550 = vmatpush.msra.mxu0 %v1531
        %1551 = vmatpush.msra.mxu0 %v1530
        %1552 = vmatpush.msra.mxu0 %v1529
        %1553 = vmatpush.msra.mxu0 %v1528
        %1554 = vmatpush.msra.mxu0 %v1527
        %1555 = vmatpush.msra.mxu0 %v1526
        %1556 = vmatpush.msra.mxu0 %v1525
        %1557 = vmatmul.f32.gmra.mxu0 %v1501
        %v1558 = vpop.f32.mrf.mxu0
        %v1559 = vadd.f32 0.0, %v1558
        %1560 = vmatmul.f32.gmra.mxu0 %v1502
        %v1561 = vpop.f32.mrf.mxu0
        %v1562 = vadd.f32 0.0, %v1561
        %1563 = vmatmul.f32.gmra.mxu0 %v1503
        %v1564 = vpop.f32.mrf.mxu0
        %v1565 = vadd.f32 0.0, %v1564
        %1566 = vdwg.mxu0
        %1567 = vmatpush.msra.mxu0 %v1523
        %1568 = vmatpush.msra.mxu0 %v1522
        %1569 = vmatpush.msra.mxu0 %v1521
        %1570 = vmatpush.msra.mxu0 %v1520
        %1571 = vmatpush.msra.mxu0 %v1519
        %1572 = vmatpush.msra.mxu0 %v1518
        %1573 = vmatpush.msra.mxu0 %v1517
        %1574 = vmatpush.msra.mxu0 %v1516
        %1575 = vmatpush.msra.mxu0 %v1515
        %1576 = vmatpush.msra.mxu0 %v1514
        %1577 = vmatpush.msra.mxu0 %v1513
        %1578 = vmatpush.msra.mxu0 %v1512
        %1579 = vmatpush.msra.mxu0 %v1511
        %1580 = vmatpush.msra.mxu0 %v1510
        %1581 = vmatpush.msra.mxu0 %v1509
        %1582 = vmatpush.msra.mxu0 %v1508
        %1583 = vmatmul.f32.gmra.mxu0 %v1498
        %v1584 = vpop.f32.mrf.mxu0
        %v1585 = vadd.f32 %v1559, %v1584
        %1586 = vmatmul.f32.gmra.mxu0 %v1499
        %v1587 = vpop.f32.mrf.mxu0
        %v1588 = vadd.f32 %v1562, %v1587
        %1589 = vmatmul.f32.gmra.mxu0 %v1500
        %v1590 = vpop.f32.mrf.mxu0
        %v1591 = vadd.f32 %v1565, %v1590
        %1592 = vdwg.mxu0
        %s1593 = scalar_lea.vmem [#allocation5], 3328
        %v1594 = vld [vmem:[%s1593] sm:$0xff]
        %v1595 = vld [vmem:[%s1593 + $0x8] sm:$0xff]
        %v1596 = vld [vmem:[%s1593 + $0x10] sm:$0xff]
        %v1597 = vld [vmem:[%s1593 + $0x18] sm:$0xff]
        %v1598 = vld [vmem:[%s1593 + $0x20] sm:$0xff]
        %v1599 = vld [vmem:[%s1593 + $0x28] sm:$0xff]
        %v1600 = vld [vmem:[%s1593 + $0x30] sm:$0xff]
        %v1601 = vld [vmem:[%s1593 + $0x38] sm:$0xff]
        %v1602 = vld [vmem:[%s1593 + $0x40] sm:$0xff]
        %v1603 = vld [vmem:[%s1593 + $0x48] sm:$0xff]
        %v1604 = vld [vmem:[%s1593 + $0x50] sm:$0xff]
        %v1605 = vld [vmem:[%s1593 + $0x58] sm:$0xff]
        %v1606 = vld [vmem:[%s1593 + $0x60] sm:$0xff]
        %v1607 = vld [vmem:[%s1593 + $0x68] sm:$0xff]
        %v1608 = vld [vmem:[%s1593 + $0x70] sm:$0xff]
        %v1609 = vld [vmem:[%s1593 + $0x78] sm:$0xff]
        %1610 = vmatpush.msra.mxu0 %v1609
        %1611 = vmatpush.msra.mxu0 %v1608
        %1612 = vmatpush.msra.mxu0 %v1607
        %1613 = vmatpush.msra.mxu0 %v1606
        %1614 = vmatpush.msra.mxu0 %v1605
        %1615 = vmatpush.msra.mxu0 %v1604
        %1616 = vmatpush.msra.mxu0 %v1603
        %1617 = vmatpush.msra.mxu0 %v1602
        %1618 = vmatpush.msra.mxu0 %v1601
        %1619 = vmatpush.msra.mxu0 %v1600
        %1620 = vmatpush.msra.mxu0 %v1599
        %1621 = vmatpush.msra.mxu0 %v1598
        %1622 = vmatpush.msra.mxu0 %v1597
        %1623 = vmatpush.msra.mxu0 %v1596
        %1624 = vmatpush.msra.mxu0 %v1595
        %1625 = vmatpush.msra.mxu0 %v1594
        %1626 = vmatmul.f32.gmra.mxu0 %v1504
        %v1627 = vpop.f32.mrf.mxu0
        %v1628 = vadd.f32 0.0, %v1627
        %1629 = vmatmul.f32.gmra.mxu0 %v1505
        %v1630 = vpop.f32.mrf.mxu0
        %v1631 = vadd.f32 0.0, %v1630
        %1632 = vmatmul.f32.gmra.mxu0 %v1506
        %v1633 = vpop.f32.mrf.mxu0
        %v1634 = vadd.f32 0.0, %v1633
        %1635 = vdwg.mxu0
        %v1636 = vadd.f32 %v1585, %v1628
        %v1637 = vadd.f32 %v1588, %v1631
        %v1638 = vadd.f32 %v1591, %v1634
        %v1639 = vld [vmem:[%s1486 + $0x1] sm:$0x1]
        %v1640 = vperm.slane %v1639, 0
        %v1641 = vadd.f32 %v1636, %v1640
        %v1642 = vadd.f32 %v1637, %v1640
        %v1643 = vadd.f32 %v1638, %v1640
        %v1644 = vld [vmem:[#allocation2 + $0x1] sm:$0xff]
        %v1645 = vld [vmem:[#allocation2 + $0x9] sm:$0xff]
        %v1646 = vld [vmem:[#allocation2 + $0x11] sm:$0x3]
        %s1647 = scalar_lea.vmem [#allocation5], 3456
        %v1648 = vld [vmem:[%s1647] sm:$0xff]
        %v1649 = vld [vmem:[%s1647 + $0x8] sm:$0xff]
        %v1650 = vld [vmem:[%s1647 + $0x10] sm:$0xff]
        %v1651 = vld [vmem:[%s1647 + $0x18] sm:$0xff]
        %v1652 = vld [vmem:[%s1647 + $0x20] sm:$0xff]
        %v1653 = vld [vmem:[%s1647 + $0x28] sm:$0xff]
        %v1654 = vld [vmem:[%s1647 + $0x30] sm:$0xff]
        %v1655 = vld [vmem:[%s1647 + $0x38] sm:$0xff]
        %v1656 = vld [vmem:[%s1647 + $0x40] sm:$0xff]
        %v1657 = vld [vmem:[%s1647 + $0x48] sm:$0xff]
        %v1658 = vld [vmem:[%s1647 + $0x50] sm:$0xff]
        %v1659 = vld [vmem:[%s1647 + $0x58] sm:$0xff]
        %v1660 = vld [vmem:[%s1647 + $0x60] sm:$0xff]
        %v1661 = vld [vmem:[%s1647 + $0x68] sm:$0xff]
        %v1662 = vld [vmem:[%s1647 + $0x70] sm:$0xff]
        %v1663 = vld [vmem:[%s1647 + $0x78] sm:$0xff]
        %v1664 = vld [vmem:[%s1486 + $0x2] sm:$0x1]
        %v1665 = vperm.slane %v1664, 0
        %1666 = vmatpush.msra.mxu0 %v1663
        %1667 = vmatpush.msra.mxu0 %v1662
        %1668 = vmatpush.msra.mxu0 %v1661
        %1669 = vmatpush.msra.mxu0 %v1660
        %1670 = vmatpush.msra.mxu0 %v1659
        %1671 = vmatpush.msra.mxu0 %v1658
        %1672 = vmatpush.msra.mxu0 %v1657
        %1673 = vmatpush.msra.mxu0 %v1656
        %1674 = vmatpush.msra.mxu0 %v1655
        %1675 = vmatpush.msra.mxu0 %v1654
        %1676 = vmatpush.msra.mxu0 %v1653
        %1677 = vmatpush.msra.mxu0 %v1652
        %1678 = vmatpush.msra.mxu0 %v1651
        %1679 = vmatpush.msra.mxu0 %v1650
        %1680 = vmatpush.msra.mxu0 %v1649
        %1681 = vmatpush.msra.mxu0 %v1648
        %1682 = vmatmul.f32.gmra.mxu0 %v1644
        %v1683 = vpop.f32.mrf.mxu0
        %v1684 = vadd.f32 %v1665, %v1683
        %1685 = vmatmul.f32.gmra.mxu0 %v1645
        %v1686 = vpop.f32.mrf.mxu0
        %v1687 = vadd.f32 %v1665, %v1686
        %1688 = vmatmul.f32.gmra.mxu0 %v1646
        %v1689 = vpop.f32.mrf.mxu0
        %v1690 = vadd.f32 %v1665, %v1689
        %1691 = vdwg.mxu0
        %v1692 = vadd.f32 %v1641, %v1684
        %v1693 = vadd.f32 %v1642, %v1687
        %v1694 = vadd.f32 %v1643, %v1690
        %v1695 = vmax.f32 %v1692, 0.0
        %v1696 = vmax.f32 %v1693, 0.0
        %v1697 = vmax.f32 %v1694, 0.0
        %1698 = vst [vmem:[#allocation2 + $0x1] sm:$0xff] %v1695
        %1699 = vst [vmem:[#allocation2 + $0x9] sm:$0xff] %v1696
        %1700 = vst [vmem:[#allocation2 + $0x11] sm:$0x3] %v1697
        %v1701 = vld [vmem:[#allocation2 + $0x1] sm:$0xff]
        %v1702 = vld [vmem:[#allocation2 + $0x9] sm:$0xff]
        %v1703 = vld [vmem:[#allocation2 + $0x11] sm:$0x3]
        %v1705 = vrot.slane %v1701, 1
        %v1707 = vadd.f32 %v1701, %v1705
        %v1708 = vrot.slane %v1701, 2
        %v1710 = vadd.f32 %v1707, %v1708
        %v1711 = vmul.f32 %v1710, 0.33333334
        %v1713 = vrot.slane %v1702, 2
        %v1715 = vadd.f32 %v1707, %v1713
        %v1716 = vmul.f32 %v1715, 0.33333334
        %v1718 = vrot.slane %v1711, 3
        %v1720 = vmax.f32 %v1711, %v1718
        %v1722 = vrot.slane %v1716, 6
        %v1724 = vmax.f32 %v1720, %v1722
        %v1725 = vld [vmem:[#allocation9] sm:$0x1]
        %v1726 = vmul.f32 %v1724, %v1725
        %v1727 = vadd.f32 %v1726, 0.0
        %v1728 = vrot.slane %v1702, 1
        %v1730 = vadd.f32 %v1702, %v1728
        %v1731 = vadd.f32 %v1730, %v1713
        %v1732 = vmul.f32 %v1731, 0.33333334
        %v1734 = vrot.slane %v1703, 1
        %v1736 = vadd.f32 %v1702, %v1734
        %v1737 = vrot.slane %v1703, 2
        %v1739 = vadd.f32 %v1736, %v1737
        %v1740 = vmul.f32 %v1739, 0.33333334
        %v1742 = vrot.slane %v1732, 3
        %v1744 = vmax.f32 %v1732, %v1742
        %v1746 = vrot.slane %v1740, 6
        %v1748 = vmax.f32 %v1744, %v1746
        %v1749 = vld [vmem:[#allocation9 + $0x1] sm:$0x1]
        %v1751 = vrot.slane %v1749, 7
        %v1753 = vmul.f32 %v1748, %v1751
        %v1755 = vrot.slane %v1753, 1
        %v1757 = vadd.f32 %v1727, %v1755
        %vm1758 = vcmask 1040384
        %v1759 = vsel %vm1758, %v1757, 0.0
        %1760 = vadd.xlane.f32.xlu0 %v1759
        %v1761 = vpop.xlane.xlu0 %1760
        %v1762 = vrot.slane %v1761, 4
        %v1763 = vadd.f32 %v1761, %v1762
        %v1764 = vrot.slane %v1763, 2
        %v1765 = vadd.f32 %v1763, %v1764
        %v1766 = vrot.slane %v1765, 1
        %v1767 = vadd.f32 %v1765, %v1766
        %s1768 = vtos %v1767
        %s1769 = sld [smem:[#allocation4]]
        %s1770 = sadd.f32 %s1768, %s1769
        %v1771 = vstv %s1770
        %1772 = vst [vmem:[%s269] sm:$0x1] %v1771
        %p1773 = scmp.lt.s32.totalorder %s19, 1
        %s1774 = scalar_select %p1773, %s19, 1
        %s1775 = scalar_lea.vmem %s5, %s1774
        // Predicated region
        $region53: #{cnn_forward.1} parent=39 // pred_check
          %p1776 = pneg %p147
        $region54: #{cnn_forward.1} parent=39 // pred_check_branch
          %1778 = sbr.rel (%p1776) target = $region56
        $region55: #{cnn_forward.1} parent=39 // pred_region
          _
        $region56: #{cnn_forward.1} parent=39 // pred_fallthru
          _
      $region40: #{cnn_forward.1} parent=5 // pred_fallthru
        _
      %p1779 = scmp.le.s32.totalorder 2, %s14
      // Predicated region
      $region57: #{cnn_forward.1} parent=5 // pred_check
        %p1780 = pneg %p1779
      $region58: #{cnn_forward.1} parent=5 // pred_check_branch
        %1782 = sbr.rel (%p1780) target = $region60
      $region59: #{cnn_forward.1} parent=5 // pred_region
        %s1783 = ssub.s32 %s14, 2
        // Predicated region
        $region61: #{cnn_forward.1} parent=59 // pred_check
          %p1784 = pneg %p153
        $region62: #{cnn_forward.1} parent=59 // pred_check_branch
          %1786 = sbr.rel (%p1784) target = $region64
        $region63: #{cnn_forward.1} parent=59 // pred_region
          %p1787 = scmp.lt.s32.totalorder %s20, 1
          %s1788 = scalar_select %p1787, %s20, 1
          %s1789 = scalar_lea.vmem %s5, %s1788
        $region64: #{cnn_forward.1} parent=59 // pred_fallthru
          _
      $region60: #{cnn_forward.1} parent=5 // pred_fallthru
        _
    $region6: #{cnn_forward.1} parent=1 // loop_footer
      %s18 = sadd.s32 1, %s14
    $region7: #{cnn_forward.1} parent=1 // loop_footer_branch
      %13 = sbr.rel target = $region3
    $region8: #{cnn_forward.1} parent=1 // loop_exit
      _
    %1790 = vsyncpa [#allocation6], 1
    %s1791 = scalar_lea.sflag [#allocation6], 1
    %1792 = vsyncpa %s1791, 1
    %1793 = vsyncpa [#allocation8], 1

</llo_original>
